<compile_context>
chip_gen: v7x
topology: tpu7x:2x2x1
jax: 0.10.0
libtpu: 0.0.40
codegen_flags: <defaults>
</compile_context>

<pallas_src>
import jax
import jax.numpy as jnp
from jax.experimental import pallas as pl
from jax.experimental.pallas import tpu as pltpu

# Per-tile VMEM budget (per pipeline buffer).  2 specs x 2 buffers x 8 MiB
# = 32 MiB working set: fits v7x's 64 MiB physical VMEM with headroom and is
# far inside v5e/v6e's 128 MiB.
_TILE_BYTES_CAP = 8 * 1024 * 1024
# Explicit scoped-VMEM limit (defaults: 16 MiB v5e, 32 MiB v6e/v7x).
_VMEM_LIMIT_BYTES = 48 * 1024 * 1024
# Bound static unrolling of the per-batch transpose loop.
_MAX_BATCH_TILE = 32


def _unembed_kernel_2d(x_ref, o_ref):
    # x_ref: (TL_or_L, C), o_ref: (C, TL_or_L).  Batch dim squeezed out by
    # the BlockSpec, so this lowers to a clean 2D XLU transpose.
    o_ref[...] = x_ref[...].T


def _make_unembed_kernel_3d(bt: int):
    # x_ref: (Bt, L, C) -> o_ref: (Bt, C, L).  Short static loop of 2D
    # transposes (Bt is small) keeps the lowering simple.
    def kernel(x_ref, o_ref):
        for b in range(bt):
            o_ref[b] = x_ref[b].T
    return kernel


def _largest_divisor_at_most(n: int, cap: int) -> int:
    cap = max(1, min(n, cap))
    for d in range(cap, 0, -1):
        if n % d == 0:
            return d
    return 1


def _choose_seq_tile(l_pad: int, c: int, itemsize: int, cap_bytes: int) -> int:
    """Largest multiple of 128 dividing l_pad with TL*C*itemsize <= cap."""
    max_rows = max(128, ((cap_bytes // max(1, c * itemsize)) // 128) * 128)
    tl = min(l_pad, max_rows)
    tl = max(128, (tl // 128) * 128)
    while l_pad % tl != 0:
        tl -= 128
    return tl


def _run_first_that_lowers(x, attempts):
    """attempts: zero-arg callables, each returning a pallas_call callable.

    The first one that builds, lowers and runs wins; later entries are
    conservative fallbacks (plain "parallel" semantics, no pl.Buffered).
    """
    last_err = None
    for make in attempts:
        try:
            return jax.block_until_ready(make()(x))
        except Exception as e:  # LoweringException / compile / runtime errors
            last_err = e
    raise last_err


def _transpose_full_l(x):
    """(B, L, C) -> (B, C, L) with full-L blocks and multi-batch tiling."""
    b, l, c = x.shape
    itemsize = x.dtype.itemsize
    slab = l * c * itemsize
    bt = _largest_divisor_at_most(
        b, min(_MAX_BATCH_TILE, max(1, _TILE_BYTES_CAP // max(1, slab))))
    grid = (b // bt,)
    out_shape = jax.ShapeDtypeStruct((b, c, l), x.dtype)
    cost = pl.CostEstimate(flops=0, transcendentals=0,
                           bytes_accessed=2 * b * l * c * itemsize)

    if bt == 1:
        kernel = _unembed_kernel_2d
        in_block, out_block = (None, l, c), (None, c, l)  # squeeze batch dim
    else:
        kernel = _make_unembed_kernel_3d(bt)
        in_block, out_block = (bt, l, c), (bt, c, l)

    def build(semantics):
        return pl.pallas_call(
            kernel,
            out_shape=out_shape,
            grid_spec=pl.GridSpec(
                grid=grid,
                in_specs=[pl.BlockSpec(in_block, lambda i: (i, 0, 0))],
                out_specs=pl.BlockSpec(out_block, lambda i: (i, 0, 0)),
            ),
            compiler_params=pltpu.CompilerParams(
                dimension_semantics=semantics,
                vmem_limit_bytes=_VMEM_LIMIT_BYTES,
            ),
            cost_estimate=cost,
        )

    return _run_first_that_lowers(
        x,
        [
            # v7x: split the batch-tile axis across both TensorCores.
            lambda: build((pltpu.CORE_PARALLEL,)),
            lambda: build(("parallel",)),
        ],
    )


def _transpose_tiled_l(x, tl):
    """(B, L, C) -> (B, C, L) tiling the (128-multiple) sequence axis."""
    b, l, c = x.shape  # l is already a multiple of 128 (padded by caller)
    itemsize = x.dtype.itemsize
    grid = (b, l // tl)
    out_shape = jax.ShapeDtypeStruct((b, c, l), x.dtype)
    cost = pl.CostEstimate(flops=0, transcendentals=0,
                           bytes_accessed=2 * b * l * c * itemsize)

    def build(semantics, out_buffers):
        in_spec = pl.BlockSpec((None, tl, c), lambda i, j: (i, j, 0))
        if out_buffers is None:
            out_spec = pl.BlockSpec((None, c, tl), lambda i, j: (i, 0, j))
        else:
            # Extra output buffer hides the slower strided writeback.
            out_spec = pl.BlockSpec((None, c, tl), lambda i, j: (i, 0, j),
                                    pipeline_mode=pl.Buffered(out_buffers))
        return pl.pallas_call(
            _unembed_kernel_2d,
            out_shape=out_shape,
            grid_spec=pl.GridSpec(grid=grid, in_specs=[in_spec],
                                  out_specs=out_spec),
            compiler_params=pltpu.CompilerParams(
                dimension_semantics=semantics,
                vmem_limit_bytes=_VMEM_LIMIT_BYTES,
            ),
            cost_estimate=cost,
        )

    return _run_first_that_lowers(
        x,
        [
            lambda: build((pltpu.CORE_PARALLEL, pltpu.ARBITRARY), 3),
            lambda: build(("parallel", "arbitrary"), None),
        ],
    )


def patch_unembed(x: jax.Array, x_size: tuple[int, int],
                  embed_dim: int) -> jax.Array:
    """x: (B, H*W, C) with C == embed_dim -> (B, embed_dim, H, W)."""
    b, l, c = x.shape
    h, w = x_size
    assert l == h * w, "sequence length must equal H*W"
    assert c == embed_dim, "channel dim must equal embed_dim"

    itemsize = x.dtype.itemsize
    slab = l * c * itemsize

    if slab <= _TILE_BYTES_CAP:
        # Full-L blocks (contiguous read + write), multiple batches per step.
        out_t = _transpose_full_l(x)
    else:
        # Tile L; pad to a 128 multiple so tiles stay lane-dense.
        l_pad = -(-l // 128) * 128
        x_work = x if l_pad == l else jnp.pad(x, ((0, 0), (0, l_pad - l), (0, 0)))
        tl = _choose_seq_tile(l_pad, c, itemsize, _TILE_BYTES_CAP)
        out_t = _transpose_tiled_l(x_work, tl)
        if l_pad != l:
            out_t = out_t[:, :, :l]

    # Free reshape: split L -> (H, W) to get NCHW.
    return out_t.reshape(b, embed_dim, h, w)


if __name__ == "__main__":
    # Shapes consistent with the module:
    #   image_size=(128, 128), patch_size=(4, 4) -> patches_resolution=(32, 32)
    #   embed_dim = 32, batch = 2, x_size = (32, 32) -> L = 1024
    # slab = 128 KiB -> full-L path with Bt=2 (grid of a single big step).
    B, H, W, embed_dim = 2, 32, 32, 32
    L = H * W

    key = jax.random.PRNGKey(0)
    x = jax.random.normal(key, (B, L, embed_dim), dtype=jnp.float32)

    out = jax.block_until_ready(patch_unembed(x, (H, W), embed_dim))

    # Reference check against the pure-JAX equivalent of the PyTorch forward.
    ref = jnp.transpose(x, (0, 2, 1)).reshape(B, embed_dim, H, W)
    assert out.shape == (B, embed_dim, H, W)
    assert out.dtype == x.dtype
    assert jnp.array_equal(out, ref)

    print("KERNEL_OK")
</pallas_src>

<mosaic_0001>
module attributes {stable_mosaic.version = 11 : i64} {
  func.func @kernel(%arg0: i32, %arg1: memref<2x1024x32xf32, #tpu.memory_space<vmem>>, %arg2: memref<2x32x1024xf32, #tpu.memory_space<vmem>>) attributes {dimension_semantics = [#tpu.dimension_semantics<core_parallel>], iteration_bounds = array<i64: 1>, scalar_prefetch = 0 : i64, scratch_operands = 0 : i64, tpu.core_type = #tpu.core_type<tc>, window_params = [{transform_indices = @transform_0, window_bounds = array<i64: 2, 1024, 32>}, {transform_indices = @transform_1, window_bounds = array<i64: 2, 32, 1024>}]} {
    %c0 = arith.constant 0 : index
    %c0_0 = arith.constant 0 : index
    %c0_1 = arith.constant 0 : index
    %0 = vector.load %arg1[%c0, %c0_0, %c0_1] : memref<2x1024x32xf32, #tpu.memory_space<vmem>>, vector<1x1024x32xf32>
    %1 = vector.shape_cast %0 : vector<1x1024x32xf32> to vector<1024x32xf32>
    %2 = tpu.transpose %1, [1, 0] : vector<1024x32xf32> -> vector<32x1024xf32>
    %c0_2 = arith.constant 0 : index
    %c0_3 = arith.constant 0 : index
    %c0_4 = arith.constant 0 : index
    %3 = vector.load %arg2[%c0_2, %c0_3, %c0_4] : memref<2x32x1024xf32, #tpu.memory_space<vmem>>, vector<1x32x1024xf32>
    %4 = vector.shape_cast %3 : vector<1x32x1024xf32> to vector<32x1024xf32>
    %5 = vector.shape_cast %2 : vector<32x1024xf32> to vector<1x32x1024xf32>
    tpu.vector_store %arg2[%c0_2, %c0_3, %c0_4], %5 {strides = array<i32>} : memref<2x32x1024xf32, #tpu.memory_space<vmem>>, vector<1x32x1024xf32>,
    %c1 = arith.constant 1 : index
    %c0_5 = arith.constant 0 : index
    %c0_6 = arith.constant 0 : index
    %6 = vector.load %arg1[%c1, %c0_5, %c0_6] : memref<2x1024x32xf32, #tpu.memory_space<vmem>>, vector<1x1024x32xf32>
    %7 = vector.shape_cast %6 : vector<1x1024x32xf32> to vector<1024x32xf32>
    %8 = tpu.transpose %7, [1, 0] : vector<1024x32xf32> -> vector<32x1024xf32>
    %c1_7 = arith.constant 1 : index
    %c0_8 = arith.constant 0 : index
    %c0_9 = arith.constant 0 : index
    %9 = vector.load %arg2[%c1_7, %c0_8, %c0_9] : memref<2x32x1024xf32, #tpu.memory_space<vmem>>, vector<1x32x1024xf32>
    %10 = vector.shape_cast %9 : vector<1x32x1024xf32> to vector<32x1024xf32>
    %11 = vector.shape_cast %8 : vector<32x1024xf32> to vector<1x32x1024xf32>
    tpu.vector_store %arg2[%c1_7, %c0_8, %c0_9], %11 {strides = array<i32>} : memref<2x32x1024xf32, #tpu.memory_space<vmem>>, vector<1x32x1024xf32>,
    return
  }
  func.func @transform_0(%arg0: i32) -> (i32, i32, i32) {
    %c0_i32 = arith.constant 0 : i32
    %c0_i32_0 = arith.constant 0 : i32
    %c0_i32_1 = arith.constant 0 : i32
    return %arg0, %c0_i32, %c0_i32_0 : i32, i32, i32
  }
  func.func @transform_1(%arg0: i32) -> (i32, i32, i32) {
    %c0_i32 = arith.constant 0 : i32
    %c0_i32_0 = arith.constant 0 : i32
    %c0_i32_1 = arith.constant 0 : i32
    return %arg0, %c0_i32, %c0_i32_0 : i32, i32, i32
  }
}

module attributes {stable_mosaic.version = 11 : i64} {
  func.func @kernel(%arg0: i32, %arg1: memref<2x1024x32xf32, #tpu.memory_space<vmem>>, %arg2: memref<2x32x1024xf32, #tpu.memory_space<vmem>>) attributes {dimension_semantics = [#tpu.dimension_semantics<parallel>], iteration_bounds = array<i64: 1>, scalar_prefetch = 0 : i64, scratch_operands = 0 : i64, tpu.core_type = #tpu.core_type<tc>, window_params = [{transform_indices = @transform_0, window_bounds = array<i64: 2, 1024, 32>}, {transform_indices = @transform_1, window_bounds = array<i64: 2, 32, 1024>}]} {
    %c0 = arith.constant 0 : index
    %c0_0 = arith.constant 0 : index
    %c0_1 = arith.constant 0 : index
    %0 = vector.load %arg1[%c0, %c0_0, %c0_1] : memref<2x1024x32xf32, #tpu.memory_space<vmem>>, vector<1x1024x32xf32>
    %1 = vector.shape_cast %0 : vector<1x1024x32xf32> to vector<1024x32xf32>
    %2 = tpu.transpose %1, [1, 0] : vector<1024x32xf32> -> vector<32x1024xf32>
    %c0_2 = arith.constant 0 : index
    %c0_3 = arith.constant 0 : index
    %c0_4 = arith.constant 0 : index
    %3 = vector.load %arg2[%c0_2, %c0_3, %c0_4] : memref<2x32x1024xf32, #tpu.memory_space<vmem>>, vector<1x32x1024xf32>
    %4 = vector.shape_cast %3 : vector<1x32x1024xf32> to vector<32x1024xf32>
    %5 = vector.shape_cast %2 : vector<32x1024xf32> to vector<1x32x1024xf32>
    tpu.vector_store %arg2[%c0_2, %c0_3, %c0_4], %5 {strides = array<i32>} : memref<2x32x1024xf32, #tpu.memory_space<vmem>>, vector<1x32x1024xf32>,
    %c1 = arith.constant 1 : index
    %c0_5 = arith.constant 0 : index
    %c0_6 = arith.constant 0 : index
    %6 = vector.load %arg1[%c1, %c0_5, %c0_6] : memref<2x1024x32xf32, #tpu.memory_space<vmem>>, vector<1x1024x32xf32>
    %7 = vector.shape_cast %6 : vector<1x1024x32xf32> to vector<1024x32xf32>
    %8 = tpu.transpose %7, [1, 0] : vector<1024x32xf32> -> vector<32x1024xf32>
    %c1_7 = arith.constant 1 : index
    %c0_8 = arith.constant 0 : index
    %c0_9 = arith.constant 0 : index
    %9 = vector.load %arg2[%c1_7, %c0_8, %c0_9] : memref<2x32x1024xf32, #tpu.memory_space<vmem>>, vector<1x32x1024xf32>
    %10 = vector.shape_cast %9 : vector<1x32x1024xf32> to vector<32x1024xf32>
    %11 = vector.shape_cast %8 : vector<32x1024xf32> to vector<1x32x1024xf32>
    tpu.vector_store %arg2[%c1_7, %c0_8, %c0_9], %11 {strides = array<i32>} : memref<2x32x1024xf32, #tpu.memory_space<vmem>>, vector<1x32x1024xf32>,
    return
  }
  func.func @transform_0(%arg0: i32) -> (i32, i32, i32) {
    %c0_i32 = arith.constant 0 : i32
    %c0_i32_0 = arith.constant 0 : i32
    %c0_i32_1 = arith.constant 0 : i32
    return %arg0, %c0_i32, %c0_i32_0 : i32, i32, i32
  }
  func.func @transform_1(%arg0: i32) -> (i32, i32, i32) {
    %c0_i32 = arith.constant 0 : i32
    %c0_i32_0 = arith.constant 0 : i32
    %c0_i32_1 = arith.constant 0 : i32
    return %arg0, %c0_i32, %c0_i32_0 : i32, i32, i32
  }
}

</mosaic_0001>

<llo_original>
// kernel: tpu_custom_call.1
$region0: #{tpu_custom_call.1}
  #allocation0 [shape = 'u32[]', space=smem, size = 0x4, offset = 0x4, fixed_abs, tag = 'smem constant byte address 0x4 - core index']
  #allocation1 [shape = 'u32[144,128]{1,0:T(1,128)}', space=vmem, size = 0x12000, scoped, tag = 'internal scratch']
  %s0 = inlined_call_operand.vmem [shape: f32[2,1024,32], index: 0, kind: input, shape index: {}]
  %s1 = inlined_call_operand.hbm [shape: f32[2,32,1024], index: 1, kind: output, shape index: {}]
  %s2 = sld [smem:[#allocation0]]
  $region14: #{tpu_custom_call.1} parent=0
    _
  %s4 = ssub.s32 1, %s2
  %s5 = scalar_select 0, %s4, %s2
  $region1: #{tpu_custom_call.1} parent=0
    #allocation2 [shape = 'u8[262144]{0}', space=vmem, size = 0x40000, scoped, tag = 'output window, operand 0, single buffered']
    #allocation3 [shape = 's32[1]{0}', space=sflag, size = 0x4, scoped, tag = 'scoped memory for tpu_custom_call.1']
    %6 = vsyncpa [#allocation3], 0
    // Predicated region
    $region2: #{tpu_custom_call.1} parent=1 // pred_check
      _
    $region3: #{tpu_custom_call.1} parent=1 // pred_check_branch
      %8 = sbr.rel (0) target = $region5
    $region4: #{tpu_custom_call.1} parent=1 // pred_region
      %s9 = smul.u32 2, %s5
      %p10 = scmp.lt.s32.totalorder %s9, 1
      %s11 = scalar_select %p10, %s9, 1
      %s12 = smul.addr %s11, 128
      %s13 = smul.addr %s12, 8
      %s14 = scalar_lea.vmem %s0, %s13
      %s15 = smul.u32 2, %s5
    $region5: #{tpu_custom_call.1} parent=1 // pred_fallthru
      _
    %s16 = smul.u32 2, %s5
    %p17 = scmp.lt.s32.totalorder %s16, 1
    %s18 = scalar_select %p17, %s16, 1
    %s19 = smul.addr %s18, 128
    %s20 = smul.addr %s19, 8
    %s21 = scalar_lea.vmem %s0, %s20
    %s22 = smul.u32 2, %s5
    %p23 = scmp.lt.s32.totalorder %s22, 1
    %s24 = scalar_select %p23, %s22, 1
    %s25 = smul.addr %s24, 128
    %s26 = smul.addr %s25, 8
    %s27 = scalar_lea.vmem %s0, %s26
    %s28 = smul.u32 2, %s5
    %s29 = smul.u32 2, %s5
    %v30 = vld [vmem:[%s27] sm:$0xff]
    %v31 = vld [vmem:[%s27 + $0x8] sm:$0xff]
    %v32 = vld [vmem:[%s27 + $0x10] sm:$0xff]
    %v33 = vld [vmem:[%s27 + $0x18] sm:$0xff]
    %v34 = vld [vmem:[%s27 + $0x20] sm:$0xff]
    %v35 = vld [vmem:[%s27 + $0x28] sm:$0xff]
    %v36 = vld [vmem:[%s27 + $0x30] sm:$0xff]
    %v37 = vld [vmem:[%s27 + $0x38] sm:$0xff]
    %v38 = vld [vmem:[%s27 + $0x40] sm:$0xff]
    %v39 = vld [vmem:[%s27 + $0x48] sm:$0xff]
    %v40 = vld [vmem:[%s27 + $0x50] sm:$0xff]
    %v41 = vld [vmem:[%s27 + $0x58] sm:$0xff]
    %v42 = vld [vmem:[%s27 + $0x60] sm:$0xff]
    %v43 = vld [vmem:[%s27 + $0x68] sm:$0xff]
    %v44 = vld [vmem:[%s27 + $0x70] sm:$0xff]
    %v45 = vld [vmem:[%s27 + $0x78] sm:$0xff]
    %v46 = vld [vmem:[%s27 + $0x80] sm:$0xff]
    %v47 = vld [vmem:[%s27 + $0x88] sm:$0xff]
    %v48 = vld [vmem:[%s27 + $0x90] sm:$0xff]
    %v49 = vld [vmem:[%s27 + $0x98] sm:$0xff]
    %v50 = vld [vmem:[%s27 + $0xa0] sm:$0xff]
    %v51 = vld [vmem:[%s27 + $0xa8] sm:$0xff]
    %v52 = vld [vmem:[%s27 + $0xb0] sm:$0xff]
    %v53 = vld [vmem:[%s27 + $0xb8] sm:$0xff]
    %v54 = vld [vmem:[%s27 + $0xc0] sm:$0xff]
    %v55 = vld [vmem:[%s27 + $0xc8] sm:$0xff]
    %v56 = vld [vmem:[%s27 + $0xd0] sm:$0xff]
    %v57 = vld [vmem:[%s27 + $0xd8] sm:$0xff]
    %v58 = vld [vmem:[%s27 + $0xe0] sm:$0xff]
    %v59 = vld [vmem:[%s27 + $0xe8] sm:$0xff]
    %v60 = vld [vmem:[%s27 + $0xf0] sm:$0xff]
    %v61 = vld [vmem:[%s27 + $0xf8] sm:$0xff]
    %v62 = vld [vmem:[%s27 + $0x100] sm:$0xff]
    %v63 = vld [vmem:[%s27 + $0x108] sm:$0xff]
    %v64 = vld [vmem:[%s27 + $0x110] sm:$0xff]
    %v65 = vld [vmem:[%s27 + $0x118] sm:$0xff]
    %v66 = vld [vmem:[%s27 + $0x120] sm:$0xff]
    %v67 = vld [vmem:[%s27 + $0x128] sm:$0xff]
    %v68 = vld [vmem:[%s27 + $0x130] sm:$0xff]
    %v69 = vld [vmem:[%s27 + $0x138] sm:$0xff]
    %v70 = vld [vmem:[%s27 + $0x140] sm:$0xff]
    %v71 = vld [vmem:[%s27 + $0x148] sm:$0xff]
    %v72 = vld [vmem:[%s27 + $0x150] sm:$0xff]
    %v73 = vld [vmem:[%s27 + $0x158] sm:$0xff]
    %v74 = vld [vmem:[%s27 + $0x160] sm:$0xff]
    %v75 = vld [vmem:[%s27 + $0x168] sm:$0xff]
    %v76 = vld [vmem:[%s27 + $0x170] sm:$0xff]
    %v77 = vld [vmem:[%s27 + $0x178] sm:$0xff]
    %v78 = vld [vmem:[%s27 + $0x180] sm:$0xff]
    %v79 = vld [vmem:[%s27 + $0x188] sm:$0xff]
    %v80 = vld [vmem:[%s27 + $0x190] sm:$0xff]
    %v81 = vld [vmem:[%s27 + $0x198] sm:$0xff]
    %v82 = vld [vmem:[%s27 + $0x1a0] sm:$0xff]
    %v83 = vld [vmem:[%s27 + $0x1a8] sm:$0xff]
    %v84 = vld [vmem:[%s27 + $0x1b0] sm:$0xff]
    %v85 = vld [vmem:[%s27 + $0x1b8] sm:$0xff]
    %v86 = vld [vmem:[%s27 + $0x1c0] sm:$0xff]
    %v87 = vld [vmem:[%s27 + $0x1c8] sm:$0xff]
    %v88 = vld [vmem:[%s27 + $0x1d0] sm:$0xff]
    %v89 = vld [vmem:[%s27 + $0x1d8] sm:$0xff]
    %v90 = vld [vmem:[%s27 + $0x1e0] sm:$0xff]
    %v91 = vld [vmem:[%s27 + $0x1e8] sm:$0xff]
    %v92 = vld [vmem:[%s27 + $0x1f0] sm:$0xff]
    %v93 = vld [vmem:[%s27 + $0x1f8] sm:$0xff]
    %v94 = vld [vmem:[%s27 + $0x200] sm:$0xff]
    %v95 = vld [vmem:[%s27 + $0x208] sm:$0xff]
    %v96 = vld [vmem:[%s27 + $0x210] sm:$0xff]
    %v97 = vld [vmem:[%s27 + $0x218] sm:$0xff]
    %v98 = vld [vmem:[%s27 + $0x220] sm:$0xff]
    %v99 = vld [vmem:[%s27 + $0x228] sm:$0xff]
    %v100 = vld [vmem:[%s27 + $0x230] sm:$0xff]
    %v101 = vld [vmem:[%s27 + $0x238] sm:$0xff]
    %v102 = vld [vmem:[%s27 + $0x240] sm:$0xff]
    %v103 = vld [vmem:[%s27 + $0x248] sm:$0xff]
    %v104 = vld [vmem:[%s27 + $0x250] sm:$0xff]
    %v105 = vld [vmem:[%s27 + $0x258] sm:$0xff]
    %v106 = vld [vmem:[%s27 + $0x260] sm:$0xff]
    %v107 = vld [vmem:[%s27 + $0x268] sm:$0xff]
    %v108 = vld [vmem:[%s27 + $0x270] sm:$0xff]
    %v109 = vld [vmem:[%s27 + $0x278] sm:$0xff]
    %v110 = vld [vmem:[%s27 + $0x280] sm:$0xff]
    %v111 = vld [vmem:[%s27 + $0x288] sm:$0xff]
    %v112 = vld [vmem:[%s27 + $0x290] sm:$0xff]
    %v113 = vld [vmem:[%s27 + $0x298] sm:$0xff]
    %v114 = vld [vmem:[%s27 + $0x2a0] sm:$0xff]
    %v115 = vld [vmem:[%s27 + $0x2a8] sm:$0xff]
    %v116 = vld [vmem:[%s27 + $0x2b0] sm:$0xff]
    %v117 = vld [vmem:[%s27 + $0x2b8] sm:$0xff]
    %v118 = vld [vmem:[%s27 + $0x2c0] sm:$0xff]
    %v119 = vld [vmem:[%s27 + $0x2c8] sm:$0xff]
    %v120 = vld [vmem:[%s27 + $0x2d0] sm:$0xff]
    %v121 = vld [vmem:[%s27 + $0x2d8] sm:$0xff]
    %v122 = vld [vmem:[%s27 + $0x2e0] sm:$0xff]
    %v123 = vld [vmem:[%s27 + $0x2e8] sm:$0xff]
    %v124 = vld [vmem:[%s27 + $0x2f0] sm:$0xff]
    %v125 = vld [vmem:[%s27 + $0x2f8] sm:$0xff]
    %v126 = vld [vmem:[%s27 + $0x300] sm:$0xff]
    %v127 = vld [vmem:[%s27 + $0x308] sm:$0xff]
    %v128 = vld [vmem:[%s27 + $0x310] sm:$0xff]
    %v129 = vld [vmem:[%s27 + $0x318] sm:$0xff]
    %v130 = vld [vmem:[%s27 + $0x320] sm:$0xff]
    %v131 = vld [vmem:[%s27 + $0x328] sm:$0xff]
    %v132 = vld [vmem:[%s27 + $0x330] sm:$0xff]
    %v133 = vld [vmem:[%s27 + $0x338] sm:$0xff]
    %v134 = vld [vmem:[%s27 + $0x340] sm:$0xff]
    %v135 = vld [vmem:[%s27 + $0x348] sm:$0xff]
    %v136 = vld [vmem:[%s27 + $0x350] sm:$0xff]
    %v137 = vld [vmem:[%s27 + $0x358] sm:$0xff]
    %v138 = vld [vmem:[%s27 + $0x360] sm:$0xff]
    %v139 = vld [vmem:[%s27 + $0x368] sm:$0xff]
    %v140 = vld [vmem:[%s27 + $0x370] sm:$0xff]
    %v141 = vld [vmem:[%s27 + $0x378] sm:$0xff]
    %v142 = vld [vmem:[%s27 + $0x380] sm:$0xff]
    %v143 = vld [vmem:[%s27 + $0x388] sm:$0xff]
    %v144 = vld [vmem:[%s27 + $0x390] sm:$0xff]
    %v145 = vld [vmem:[%s27 + $0x398] sm:$0xff]
    %v146 = vld [vmem:[%s27 + $0x3a0] sm:$0xff]
    %v147 = vld [vmem:[%s27 + $0x3a8] sm:$0xff]
    %v148 = vld [vmem:[%s27 + $0x3b0] sm:$0xff]
    %v149 = vld [vmem:[%s27 + $0x3b8] sm:$0xff]
    %v150 = vld [vmem:[%s27 + $0x3c0] sm:$0xff]
    %v151 = vld [vmem:[%s27 + $0x3c8] sm:$0xff]
    %v152 = vld [vmem:[%s27 + $0x3d0] sm:$0xff]
    %v153 = vld [vmem:[%s27 + $0x3d8] sm:$0xff]
    %v154 = vld [vmem:[%s27 + $0x3e0] sm:$0xff]
    %v155 = vld [vmem:[%s27 + $0x3e8] sm:$0xff]
    %v156 = vld [vmem:[%s27 + $0x3f0] sm:$0xff]
    %v157 = vld [vmem:[%s27 + $0x3f8] sm:$0xff]
    %158 = vxpose.xlu0.b32.start [1/16] %v30, 128
    %159 = vxpose.xlu0.b32.cont [2/16] %v31, 128
    %160 = vxpose.xlu0.b32.cont [3/16] %v32, 128
    %161 = vxpose.xlu0.b32.cont [4/16] %v33, 128
    %162 = vxpose.xlu0.b32.cont [5/16] %v34, 128
    %163 = vxpose.xlu0.b32.cont [6/16] %v35, 128
    %164 = vxpose.xlu0.b32.cont [7/16] %v36, 128
    %165 = vxpose.xlu0.b32.cont [8/16] %v37, 128
    %166 = vxpose.xlu0.b32.cont [9/16] %v38, 128
    %167 = vxpose.xlu0.b32.cont [10/16] %v39, 128
    %168 = vxpose.xlu0.b32.cont [11/16] %v40, 128
    %169 = vxpose.xlu0.b32.cont [12/16] %v41, 128
    %170 = vxpose.xlu0.b32.cont [13/16] %v42, 128
    %171 = vxpose.xlu0.b32.cont [14/16] %v43, 128
    %172 = vxpose.xlu0.b32.cont [15/16] %v44, 128
    %173 = vxpose.xlu0.b32.end [16/16] %v45, 128
    %v174 = vpop.trf.xlu0
    %v175 = vpop.trf.xlu0
    %v176 = vpop.trf.xlu0
    %v177 = vpop.trf.xlu0
    %v178 = vpop.trf.xlu0
    %v179 = vpop.trf.xlu0
    %v180 = vpop.trf.xlu0
    %v181 = vpop.trf.xlu0
    %v182 = vpop.trf.xlu0
    %v183 = vpop.trf.xlu0
    %v184 = vpop.trf.xlu0
    %v185 = vpop.trf.xlu0
    %v186 = vpop.trf.xlu0
    %v187 = vpop.trf.xlu0
    %v188 = vpop.trf.xlu0
    %v189 = vpop.trf.xlu0
    %190 = vxpose.xlu0.b32.start [1/16] %v46, 128
    %191 = vxpose.xlu0.b32.cont [2/16] %v47, 128
    %192 = vxpose.xlu0.b32.cont [3/16] %v48, 128
    %193 = vxpose.xlu0.b32.cont [4/16] %v49, 128
    %194 = vxpose.xlu0.b32.cont [5/16] %v50, 128
    %195 = vxpose.xlu0.b32.cont [6/16] %v51, 128
    %196 = vxpose.xlu0.b32.cont [7/16] %v52, 128
    %197 = vxpose.xlu0.b32.cont [8/16] %v53, 128
    %198 = vxpose.xlu0.b32.cont [9/16] %v54, 128
    %199 = vxpose.xlu0.b32.cont [10/16] %v55, 128
    %200 = vxpose.xlu0.b32.cont [11/16] %v56, 128
    %201 = vxpose.xlu0.b32.cont [12/16] %v57, 128
    %202 = vxpose.xlu0.b32.cont [13/16] %v58, 128
    %203 = vxpose.xlu0.b32.cont [14/16] %v59, 128
    %204 = vxpose.xlu0.b32.cont [15/16] %v60, 128
    %205 = vxpose.xlu0.b32.end [16/16] %v61, 128
    %v206 = vpop.trf.xlu0
    %v207 = vpop.trf.xlu0
    %v208 = vpop.trf.xlu0
    %v209 = vpop.trf.xlu0
    %v210 = vpop.trf.xlu0
    %v211 = vpop.trf.xlu0
    %v212 = vpop.trf.xlu0
    %v213 = vpop.trf.xlu0
    %v214 = vpop.trf.xlu0
    %v215 = vpop.trf.xlu0
    %v216 = vpop.trf.xlu0
    %v217 = vpop.trf.xlu0
    %v218 = vpop.trf.xlu0
    %v219 = vpop.trf.xlu0
    %v220 = vpop.trf.xlu0
    %v221 = vpop.trf.xlu0
    %222 = vxpose.xlu0.b32.start [1/16] %v62, 128
    %223 = vxpose.xlu0.b32.cont [2/16] %v63, 128
    %224 = vxpose.xlu0.b32.cont [3/16] %v64, 128
    %225 = vxpose.xlu0.b32.cont [4/16] %v65, 128
    %226 = vxpose.xlu0.b32.cont [5/16] %v66, 128
    %227 = vxpose.xlu0.b32.cont [6/16] %v67, 128
    %228 = vxpose.xlu0.b32.cont [7/16] %v68, 128
    %229 = vxpose.xlu0.b32.cont [8/16] %v69, 128
    %230 = vxpose.xlu0.b32.cont [9/16] %v70, 128
    %231 = vxpose.xlu0.b32.cont [10/16] %v71, 128
    %232 = vxpose.xlu0.b32.cont [11/16] %v72, 128
    %233 = vxpose.xlu0.b32.cont [12/16] %v73, 128
    %234 = vxpose.xlu0.b32.cont [13/16] %v74, 128
    %235 = vxpose.xlu0.b32.cont [14/16] %v75, 128
    %236 = vxpose.xlu0.b32.cont [15/16] %v76, 128
    %237 = vxpose.xlu0.b32.end [16/16] %v77, 128
    %v238 = vpop.trf.xlu0
    %v239 = vpop.trf.xlu0
    %v240 = vpop.trf.xlu0
    %v241 = vpop.trf.xlu0
    %v242 = vpop.trf.xlu0
    %v243 = vpop.trf.xlu0
    %v244 = vpop.trf.xlu0
    %v245 = vpop.trf.xlu0
    %v246 = vpop.trf.xlu0
    %v247 = vpop.trf.xlu0
    %v248 = vpop.trf.xlu0
    %v249 = vpop.trf.xlu0
    %v250 = vpop.trf.xlu0
    %v251 = vpop.trf.xlu0
    %v252 = vpop.trf.xlu0
    %v253 = vpop.trf.xlu0
    %254 = vxpose.xlu0.b32.start [1/16] %v78, 128
    %255 = vxpose.xlu0.b32.cont [2/16] %v79, 128
    %256 = vxpose.xlu0.b32.cont [3/16] %v80, 128
    %257 = vxpose.xlu0.b32.cont [4/16] %v81, 128
    %258 = vxpose.xlu0.b32.cont [5/16] %v82, 128
    %259 = vxpose.xlu0.b32.cont [6/16] %v83, 128
    %260 = vxpose.xlu0.b32.cont [7/16] %v84, 128
    %261 = vxpose.xlu0.b32.cont [8/16] %v85, 128
    %262 = vxpose.xlu0.b32.cont [9/16] %v86, 128
    %263 = vxpose.xlu0.b32.cont [10/16] %v87, 128
    %264 = vxpose.xlu0.b32.cont [11/16] %v88, 128
    %265 = vxpose.xlu0.b32.cont [12/16] %v89, 128
    %266 = vxpose.xlu0.b32.cont [13/16] %v90, 128
    %267 = vxpose.xlu0.b32.cont [14/16] %v91, 128
    %268 = vxpose.xlu0.b32.cont [15/16] %v92, 128
    %269 = vxpose.xlu0.b32.end [16/16] %v93, 128
    %v270 = vpop.trf.xlu0
    %v271 = vpop.trf.xlu0
    %v272 = vpop.trf.xlu0
    %v273 = vpop.trf.xlu0
    %v274 = vpop.trf.xlu0
    %v275 = vpop.trf.xlu0
    %v276 = vpop.trf.xlu0
    %v277 = vpop.trf.xlu0
    %v278 = vpop.trf.xlu0
    %v279 = vpop.trf.xlu0
    %v280 = vpop.trf.xlu0
    %v281 = vpop.trf.xlu0
    %v282 = vpop.trf.xlu0
    %v283 = vpop.trf.xlu0
    %v284 = vpop.trf.xlu0
    %v285 = vpop.trf.xlu0
    %286 = vxpose.xlu0.b32.start [1/16] %v94, 128
    %287 = vxpose.xlu0.b32.cont [2/16] %v95, 128
    %288 = vxpose.xlu0.b32.cont [3/16] %v96, 128
    %289 = vxpose.xlu0.b32.cont [4/16] %v97, 128
    %290 = vxpose.xlu0.b32.cont [5/16] %v98, 128
    %291 = vxpose.xlu0.b32.cont [6/16] %v99, 128
    %292 = vxpose.xlu0.b32.cont [7/16] %v100, 128
    %293 = vxpose.xlu0.b32.cont [8/16] %v101, 128
    %294 = vxpose.xlu0.b32.cont [9/16] %v102, 128
    %295 = vxpose.xlu0.b32.cont [10/16] %v103, 128
    %296 = vxpose.xlu0.b32.cont [11/16] %v104, 128
    %297 = vxpose.xlu0.b32.cont [12/16] %v105, 128
    %298 = vxpose.xlu0.b32.cont [13/16] %v106, 128
    %299 = vxpose.xlu0.b32.cont [14/16] %v107, 128
    %300 = vxpose.xlu0.b32.cont [15/16] %v108, 128
    %301 = vxpose.xlu0.b32.end [16/16] %v109, 128
    %v302 = vpop.trf.xlu0
    %v303 = vpop.trf.xlu0
    %v304 = vpop.trf.xlu0
    %v305 = vpop.trf.xlu0
    %v306 = vpop.trf.xlu0
    %v307 = vpop.trf.xlu0
    %v308 = vpop.trf.xlu0
    %v309 = vpop.trf.xlu0
    %v310 = vpop.trf.xlu0
    %v311 = vpop.trf.xlu0
    %v312 = vpop.trf.xlu0
    %v313 = vpop.trf.xlu0
    %v314 = vpop.trf.xlu0
    %v315 = vpop.trf.xlu0
    %v316 = vpop.trf.xlu0
    %v317 = vpop.trf.xlu0
    %318 = vxpose.xlu0.b32.start [1/16] %v110, 128
    %319 = vxpose.xlu0.b32.cont [2/16] %v111, 128
    %320 = vxpose.xlu0.b32.cont [3/16] %v112, 128
    %321 = vxpose.xlu0.b32.cont [4/16] %v113, 128
    %322 = vxpose.xlu0.b32.cont [5/16] %v114, 128
    %323 = vxpose.xlu0.b32.cont [6/16] %v115, 128
    %324 = vxpose.xlu0.b32.cont [7/16] %v116, 128
    %325 = vxpose.xlu0.b32.cont [8/16] %v117, 128
    %326 = vxpose.xlu0.b32.cont [9/16] %v118, 128
    %327 = vxpose.xlu0.b32.cont [10/16] %v119, 128
    %328 = vxpose.xlu0.b32.cont [11/16] %v120, 128
    %329 = vxpose.xlu0.b32.cont [12/16] %v121, 128
    %330 = vxpose.xlu0.b32.cont [13/16] %v122, 128
    %331 = vxpose.xlu0.b32.cont [14/16] %v123, 128
    %332 = vxpose.xlu0.b32.cont [15/16] %v124, 128
    %333 = vxpose.xlu0.b32.end [16/16] %v125, 128
    %v334 = vpop.trf.xlu0
    %v335 = vpop.trf.xlu0
    %v336 = vpop.trf.xlu0
    %v337 = vpop.trf.xlu0
    %v338 = vpop.trf.xlu0
    %v339 = vpop.trf.xlu0
    %v340 = vpop.trf.xlu0
    %v341 = vpop.trf.xlu0
    %v342 = vpop.trf.xlu0
    %v343 = vpop.trf.xlu0
    %v344 = vpop.trf.xlu0
    %v345 = vpop.trf.xlu0
    %v346 = vpop.trf.xlu0
    %v347 = vpop.trf.xlu0
    %v348 = vpop.trf.xlu0
    %v349 = vpop.trf.xlu0
    %350 = vxpose.xlu0.b32.start [1/16] %v126, 128
    %351 = vxpose.xlu0.b32.cont [2/16] %v127, 128
    %352 = vxpose.xlu0.b32.cont [3/16] %v128, 128
    %353 = vxpose.xlu0.b32.cont [4/16] %v129, 128
    %354 = vxpose.xlu0.b32.cont [5/16] %v130, 128
    %355 = vxpose.xlu0.b32.cont [6/16] %v131, 128
    %356 = vxpose.xlu0.b32.cont [7/16] %v132, 128
    %357 = vxpose.xlu0.b32.cont [8/16] %v133, 128
    %358 = vxpose.xlu0.b32.cont [9/16] %v134, 128
    %359 = vxpose.xlu0.b32.cont [10/16] %v135, 128
    %360 = vxpose.xlu0.b32.cont [11/16] %v136, 128
    %361 = vxpose.xlu0.b32.cont [12/16] %v137, 128
    %362 = vxpose.xlu0.b32.cont [13/16] %v138, 128
    %363 = vxpose.xlu0.b32.cont [14/16] %v139, 128
    %364 = vxpose.xlu0.b32.cont [15/16] %v140, 128
    %365 = vxpose.xlu0.b32.end [16/16] %v141, 128
    %v366 = vpop.trf.xlu0
    %v367 = vpop.trf.xlu0
    %v368 = vpop.trf.xlu0
    %v369 = vpop.trf.xlu0
    %v370 = vpop.trf.xlu0
    %v371 = vpop.trf.xlu0
    %v372 = vpop.trf.xlu0
    %v373 = vpop.trf.xlu0
    %v374 = vpop.trf.xlu0
    %v375 = vpop.trf.xlu0
    %v376 = vpop.trf.xlu0
    %v377 = vpop.trf.xlu0
    %v378 = vpop.trf.xlu0
    %v379 = vpop.trf.xlu0
    %v380 = vpop.trf.xlu0
    %v381 = vpop.trf.xlu0
    %382 = vxpose.xlu0.b32.start [1/16] %v142, 128
    %383 = vxpose.xlu0.b32.cont [2/16] %v143, 128
    %384 = vxpose.xlu0.b32.cont [3/16] %v144, 128
    %385 = vxpose.xlu0.b32.cont [4/16] %v145, 128
    %386 = vxpose.xlu0.b32.cont [5/16] %v146, 128
    %387 = vxpose.xlu0.b32.cont [6/16] %v147, 128
    %388 = vxpose.xlu0.b32.cont [7/16] %v148, 128
    %389 = vxpose.xlu0.b32.cont [8/16] %v149, 128
    %390 = vxpose.xlu0.b32.cont [9/16] %v150, 128
    %391 = vxpose.xlu0.b32.cont [10/16] %v151, 128
    %392 = vxpose.xlu0.b32.cont [11/16] %v152, 128
    %393 = vxpose.xlu0.b32.cont [12/16] %v153, 128
    %394 = vxpose.xlu0.b32.cont [13/16] %v154, 128
    %395 = vxpose.xlu0.b32.cont [14/16] %v155, 128
    %396 = vxpose.xlu0.b32.cont [15/16] %v156, 128
    %397 = vxpose.xlu0.b32.end [16/16] %v157, 128
    %v398 = vpop.trf.xlu0
    %v399 = vpop.trf.xlu0
    %v400 = vpop.trf.xlu0
    %v401 = vpop.trf.xlu0
    %v402 = vpop.trf.xlu0
    %v403 = vpop.trf.xlu0
    %v404 = vpop.trf.xlu0
    %v405 = vpop.trf.xlu0
    %v406 = vpop.trf.xlu0
    %v407 = vpop.trf.xlu0
    %v408 = vpop.trf.xlu0
    %v409 = vpop.trf.xlu0
    %v410 = vpop.trf.xlu0
    %v411 = vpop.trf.xlu0
    %v412 = vpop.trf.xlu0
    %v413 = vpop.trf.xlu0
    %414 = vst [vmem:[#allocation2] sm:$0xff] %v174
    %415 = vst [vmem:[#allocation2 + $0x8] sm:$0xff] %v206
    %416 = vst [vmem:[#allocation2 + $0x10] sm:$0xff] %v238
    %417 = vst [vmem:[#allocation2 + $0x18] sm:$0xff] %v270
    %418 = vst [vmem:[#allocation2 + $0x20] sm:$0xff] %v302
    %419 = vst [vmem:[#allocation2 + $0x28] sm:$0xff] %v334
    %420 = vst [vmem:[#allocation2 + $0x30] sm:$0xff] %v366
    %421 = vst [vmem:[#allocation2 + $0x38] sm:$0xff] %v398
    %422 = vst [vmem:[#allocation2 + $0x40] sm:$0xff] %v175
    %423 = vst [vmem:[#allocation2 + $0x48] sm:$0xff] %v207
    %424 = vst [vmem:[#allocation2 + $0x50] sm:$0xff] %v239
    %425 = vst [vmem:[#allocation2 + $0x58] sm:$0xff] %v271
    %426 = vst [vmem:[#allocation2 + $0x60] sm:$0xff] %v303
    %427 = vst [vmem:[#allocation2 + $0x68] sm:$0xff] %v335
    %428 = vst [vmem:[#allocation2 + $0x70] sm:$0xff] %v367
    %429 = vst [vmem:[#allocation2 + $0x78] sm:$0xff] %v399
    %430 = vst [vmem:[#allocation2 + $0x80] sm:$0xff] %v176
    %431 = vst [vmem:[#allocation2 + $0x88] sm:$0xff] %v208
    %432 = vst [vmem:[#allocation2 + $0x90] sm:$0xff] %v240
    %433 = vst [vmem:[#allocation2 + $0x98] sm:$0xff] %v272
    %434 = vst [vmem:[#allocation2 + $0xa0] sm:$0xff] %v304
    %435 = vst [vmem:[#allocation2 + $0xa8] sm:$0xff] %v336
    %436 = vst [vmem:[#allocation2 + $0xb0] sm:$0xff] %v368
    %437 = vst [vmem:[#allocation2 + $0xb8] sm:$0xff] %v400
    %438 = vst [vmem:[#allocation2 + $0xc0] sm:$0xff] %v177
    %439 = vst [vmem:[#allocation2 + $0xc8] sm:$0xff] %v209
    %440 = vst [vmem:[#allocation2 + $0xd0] sm:$0xff] %v241
    %441 = vst [vmem:[#allocation2 + $0xd8] sm:$0xff] %v273
    %442 = vst [vmem:[#allocation2 + $0xe0] sm:$0xff] %v305
    %443 = vst [vmem:[#allocation2 + $0xe8] sm:$0xff] %v337
    %444 = vst [vmem:[#allocation2 + $0xf0] sm:$0xff] %v369
    %445 = vst [vmem:[#allocation2 + $0xf8] sm:$0xff] %v401
    %s446 = scalar_lea.vmem %s27, 1024
    %v447 = vld [vmem:[%s446] sm:$0xff]
    %v448 = vld [vmem:[%s446 + $0x8] sm:$0xff]
    %v449 = vld [vmem:[%s446 + $0x10] sm:$0xff]
    %v450 = vld [vmem:[%s446 + $0x18] sm:$0xff]
    %v451 = vld [vmem:[%s446 + $0x20] sm:$0xff]
    %v452 = vld [vmem:[%s446 + $0x28] sm:$0xff]
    %v453 = vld [vmem:[%s446 + $0x30] sm:$0xff]
    %v454 = vld [vmem:[%s446 + $0x38] sm:$0xff]
    %v455 = vld [vmem:[%s446 + $0x40] sm:$0xff]
    %v456 = vld [vmem:[%s446 + $0x48] sm:$0xff]
    %v457 = vld [vmem:[%s446 + $0x50] sm:$0xff]
    %v458 = vld [vmem:[%s446 + $0x58] sm:$0xff]
    %v459 = vld [vmem:[%s446 + $0x60] sm:$0xff]
    %v460 = vld [vmem:[%s446 + $0x68] sm:$0xff]
    %v461 = vld [vmem:[%s446 + $0x70] sm:$0xff]
    %v462 = vld [vmem:[%s446 + $0x78] sm:$0xff]
    %v463 = vld [vmem:[%s446 + $0x80] sm:$0xff]
    %v464 = vld [vmem:[%s446 + $0x88] sm:$0xff]
    %v465 = vld [vmem:[%s446 + $0x90] sm:$0xff]
    %v466 = vld [vmem:[%s446 + $0x98] sm:$0xff]
    %v467 = vld [vmem:[%s446 + $0xa0] sm:$0xff]
    %v468 = vld [vmem:[%s446 + $0xa8] sm:$0xff]
    %v469 = vld [vmem:[%s446 + $0xb0] sm:$0xff]
    %v470 = vld [vmem:[%s446 + $0xb8] sm:$0xff]
    %v471 = vld [vmem:[%s446 + $0xc0] sm:$0xff]
    %v472 = vld [vmem:[%s446 + $0xc8] sm:$0xff]
    %v473 = vld [vmem:[%s446 + $0xd0] sm:$0xff]
    %v474 = vld [vmem:[%s446 + $0xd8] sm:$0xff]
    %v475 = vld [vmem:[%s446 + $0xe0] sm:$0xff]
    %v476 = vld [vmem:[%s446 + $0xe8] sm:$0xff]
    %v477 = vld [vmem:[%s446 + $0xf0] sm:$0xff]
    %v478 = vld [vmem:[%s446 + $0xf8] sm:$0xff]
    %v479 = vld [vmem:[%s446 + $0x100] sm:$0xff]
    %v480 = vld [vmem:[%s446 + $0x108] sm:$0xff]
    %v481 = vld [vmem:[%s446 + $0x110] sm:$0xff]
    %v482 = vld [vmem:[%s446 + $0x118] sm:$0xff]
    %v483 = vld [vmem:[%s446 + $0x120] sm:$0xff]
    %v484 = vld [vmem:[%s446 + $0x128] sm:$0xff]
    %v485 = vld [vmem:[%s446 + $0x130] sm:$0xff]
    %v486 = vld [vmem:[%s446 + $0x138] sm:$0xff]
    %v487 = vld [vmem:[%s446 + $0x140] sm:$0xff]
    %v488 = vld [vmem:[%s446 + $0x148] sm:$0xff]
    %v489 = vld [vmem:[%s446 + $0x150] sm:$0xff]
    %v490 = vld [vmem:[%s446 + $0x158] sm:$0xff]
    %v491 = vld [vmem:[%s446 + $0x160] sm:$0xff]
    %v492 = vld [vmem:[%s446 + $0x168] sm:$0xff]
    %v493 = vld [vmem:[%s446 + $0x170] sm:$0xff]
    %v494 = vld [vmem:[%s446 + $0x178] sm:$0xff]
    %v495 = vld [vmem:[%s446 + $0x180] sm:$0xff]
    %v496 = vld [vmem:[%s446 + $0x188] sm:$0xff]
    %v497 = vld [vmem:[%s446 + $0x190] sm:$0xff]
    %v498 = vld [vmem:[%s446 + $0x198] sm:$0xff]
    %v499 = vld [vmem:[%s446 + $0x1a0] sm:$0xff]
    %v500 = vld [vmem:[%s446 + $0x1a8] sm:$0xff]
    %v501 = vld [vmem:[%s446 + $0x1b0] sm:$0xff]
    %v502 = vld [vmem:[%s446 + $0x1b8] sm:$0xff]
    %v503 = vld [vmem:[%s446 + $0x1c0] sm:$0xff]
    %v504 = vld [vmem:[%s446 + $0x1c8] sm:$0xff]
    %v505 = vld [vmem:[%s446 + $0x1d0] sm:$0xff]
    %v506 = vld [vmem:[%s446 + $0x1d8] sm:$0xff]
    %v507 = vld [vmem:[%s446 + $0x1e0] sm:$0xff]
    %v508 = vld [vmem:[%s446 + $0x1e8] sm:$0xff]
    %v509 = vld [vmem:[%s446 + $0x1f0] sm:$0xff]
    %v510 = vld [vmem:[%s446 + $0x1f8] sm:$0xff]
    %v511 = vld [vmem:[%s446 + $0x200] sm:$0xff]
    %v512 = vld [vmem:[%s446 + $0x208] sm:$0xff]
    %v513 = vld [vmem:[%s446 + $0x210] sm:$0xff]
    %v514 = vld [vmem:[%s446 + $0x218] sm:$0xff]
    %v515 = vld [vmem:[%s446 + $0x220] sm:$0xff]
    %v516 = vld [vmem:[%s446 + $0x228] sm:$0xff]
    %v517 = vld [vmem:[%s446 + $0x230] sm:$0xff]
    %v518 = vld [vmem:[%s446 + $0x238] sm:$0xff]
    %v519 = vld [vmem:[%s446 + $0x240] sm:$0xff]
    %v520 = vld [vmem:[%s446 + $0x248] sm:$0xff]
    %v521 = vld [vmem:[%s446 + $0x250] sm:$0xff]
    %v522 = vld [vmem:[%s446 + $0x258] sm:$0xff]
    %v523 = vld [vmem:[%s446 + $0x260] sm:$0xff]
    %v524 = vld [vmem:[%s446 + $0x268] sm:$0xff]
    %v525 = vld [vmem:[%s446 + $0x270] sm:$0xff]
    %v526 = vld [vmem:[%s446 + $0x278] sm:$0xff]
    %v527 = vld [vmem:[%s446 + $0x280] sm:$0xff]
    %v528 = vld [vmem:[%s446 + $0x288] sm:$0xff]
    %v529 = vld [vmem:[%s446 + $0x290] sm:$0xff]
    %v530 = vld [vmem:[%s446 + $0x298] sm:$0xff]
    %v531 = vld [vmem:[%s446 + $0x2a0] sm:$0xff]
    %v532 = vld [vmem:[%s446 + $0x2a8] sm:$0xff]
    %v533 = vld [vmem:[%s446 + $0x2b0] sm:$0xff]
    %v534 = vld [vmem:[%s446 + $0x2b8] sm:$0xff]
    %v535 = vld [vmem:[%s446 + $0x2c0] sm:$0xff]
    %v536 = vld [vmem:[%s446 + $0x2c8] sm:$0xff]
    %v537 = vld [vmem:[%s446 + $0x2d0] sm:$0xff]
    %v538 = vld [vmem:[%s446 + $0x2d8] sm:$0xff]
    %v539 = vld [vmem:[%s446 + $0x2e0] sm:$0xff]
    %v540 = vld [vmem:[%s446 + $0x2e8] sm:$0xff]
    %v541 = vld [vmem:[%s446 + $0x2f0] sm:$0xff]
    %v542 = vld [vmem:[%s446 + $0x2f8] sm:$0xff]
    %v543 = vld [vmem:[%s446 + $0x300] sm:$0xff]
    %v544 = vld [vmem:[%s446 + $0x308] sm:$0xff]
    %v545 = vld [vmem:[%s446 + $0x310] sm:$0xff]
    %v546 = vld [vmem:[%s446 + $0x318] sm:$0xff]
    %v547 = vld [vmem:[%s446 + $0x320] sm:$0xff]
    %v548 = vld [vmem:[%s446 + $0x328] sm:$0xff]
    %v549 = vld [vmem:[%s446 + $0x330] sm:$0xff]
    %v550 = vld [vmem:[%s446 + $0x338] sm:$0xff]
    %v551 = vld [vmem:[%s446 + $0x340] sm:$0xff]
    %v552 = vld [vmem:[%s446 + $0x348] sm:$0xff]
    %v553 = vld [vmem:[%s446 + $0x350] sm:$0xff]
    %v554 = vld [vmem:[%s446 + $0x358] sm:$0xff]
    %v555 = vld [vmem:[%s446 + $0x360] sm:$0xff]
    %v556 = vld [vmem:[%s446 + $0x368] sm:$0xff]
    %v557 = vld [vmem:[%s446 + $0x370] sm:$0xff]
    %v558 = vld [vmem:[%s446 + $0x378] sm:$0xff]
    %v559 = vld [vmem:[%s446 + $0x380] sm:$0xff]
    %v560 = vld [vmem:[%s446 + $0x388] sm:$0xff]
    %v561 = vld [vmem:[%s446 + $0x390] sm:$0xff]
    %v562 = vld [vmem:[%s446 + $0x398] sm:$0xff]
    %v563 = vld [vmem:[%s446 + $0x3a0] sm:$0xff]
    %v564 = vld [vmem:[%s446 + $0x3a8] sm:$0xff]
    %v565 = vld [vmem:[%s446 + $0x3b0] sm:$0xff]
    %v566 = vld [vmem:[%s446 + $0x3b8] sm:$0xff]
    %v567 = vld [vmem:[%s446 + $0x3c0] sm:$0xff]
    %v568 = vld [vmem:[%s446 + $0x3c8] sm:$0xff]
    %v569 = vld [vmem:[%s446 + $0x3d0] sm:$0xff]
    %v570 = vld [vmem:[%s446 + $0x3d8] sm:$0xff]
    %v571 = vld [vmem:[%s446 + $0x3e0] sm:$0xff]
    %v572 = vld [vmem:[%s446 + $0x3e8] sm:$0xff]
    %v573 = vld [vmem:[%s446 + $0x3f0] sm:$0xff]
    %v574 = vld [vmem:[%s446 + $0x3f8] sm:$0xff]
    %575 = vxpose.xlu0.b32.start [1/16] %v447, 128
    %576 = vxpose.xlu0.b32.cont [2/16] %v448, 128
    %577 = vxpose.xlu0.b32.cont [3/16] %v449, 128
    %578 = vxpose.xlu0.b32.cont [4/16] %v450, 128
    %579 = vxpose.xlu0.b32.cont [5/16] %v451, 128
    %580 = vxpose.xlu0.b32.cont [6/16] %v452, 128
    %581 = vxpose.xlu0.b32.cont [7/16] %v453, 128
    %582 = vxpose.xlu0.b32.cont [8/16] %v454, 128
    %583 = vxpose.xlu0.b32.cont [9/16] %v455, 128
    %584 = vxpose.xlu0.b32.cont [10/16] %v456, 128
    %585 = vxpose.xlu0.b32.cont [11/16] %v457, 128
    %586 = vxpose.xlu0.b32.cont [12/16] %v458, 128
    %587 = vxpose.xlu0.b32.cont [13/16] %v459, 128
    %588 = vxpose.xlu0.b32.cont [14/16] %v460, 128
    %589 = vxpose.xlu0.b32.cont [15/16] %v461, 128
    %590 = vxpose.xlu0.b32.end [16/16] %v462, 128
    %v591 = vpop.trf.xlu0
    %v592 = vpop.trf.xlu0
    %v593 = vpop.trf.xlu0
    %v594 = vpop.trf.xlu0
    %v595 = vpop.trf.xlu0
    %v596 = vpop.trf.xlu0
    %v597 = vpop.trf.xlu0
    %v598 = vpop.trf.xlu0
    %v599 = vpop.trf.xlu0
    %v600 = vpop.trf.xlu0
    %v601 = vpop.trf.xlu0
    %v602 = vpop.trf.xlu0
    %v603 = vpop.trf.xlu0
    %v604 = vpop.trf.xlu0
    %v605 = vpop.trf.xlu0
    %v606 = vpop.trf.xlu0
    %607 = vxpose.xlu0.b32.start [1/16] %v463, 128
    %608 = vxpose.xlu0.b32.cont [2/16] %v464, 128
    %609 = vxpose.xlu0.b32.cont [3/16] %v465, 128
    %610 = vxpose.xlu0.b32.cont [4/16] %v466, 128
    %611 = vxpose.xlu0.b32.cont [5/16] %v467, 128
    %612 = vxpose.xlu0.b32.cont [6/16] %v468, 128
    %613 = vxpose.xlu0.b32.cont [7/16] %v469, 128
    %614 = vxpose.xlu0.b32.cont [8/16] %v470, 128
    %615 = vxpose.xlu0.b32.cont [9/16] %v471, 128
    %616 = vxpose.xlu0.b32.cont [10/16] %v472, 128
    %617 = vxpose.xlu0.b32.cont [11/16] %v473, 128
    %618 = vxpose.xlu0.b32.cont [12/16] %v474, 128
    %619 = vxpose.xlu0.b32.cont [13/16] %v475, 128
    %620 = vxpose.xlu0.b32.cont [14/16] %v476, 128
    %621 = vxpose.xlu0.b32.cont [15/16] %v477, 128
    %622 = vxpose.xlu0.b32.end [16/16] %v478, 128
    %v623 = vpop.trf.xlu0
    %v624 = vpop.trf.xlu0
    %v625 = vpop.trf.xlu0
    %v626 = vpop.trf.xlu0
    %v627 = vpop.trf.xlu0
    %v628 = vpop.trf.xlu0
    %v629 = vpop.trf.xlu0
    %v630 = vpop.trf.xlu0
    %v631 = vpop.trf.xlu0
    %v632 = vpop.trf.xlu0
    %v633 = vpop.trf.xlu0
    %v634 = vpop.trf.xlu0
    %v635 = vpop.trf.xlu0
    %v636 = vpop.trf.xlu0
    %v637 = vpop.trf.xlu0
    %v638 = vpop.trf.xlu0
    %639 = vxpose.xlu0.b32.start [1/16] %v479, 128
    %640 = vxpose.xlu0.b32.cont [2/16] %v480, 128
    %641 = vxpose.xlu0.b32.cont [3/16] %v481, 128
    %642 = vxpose.xlu0.b32.cont [4/16] %v482, 128
    %643 = vxpose.xlu0.b32.cont [5/16] %v483, 128
    %644 = vxpose.xlu0.b32.cont [6/16] %v484, 128
    %645 = vxpose.xlu0.b32.cont [7/16] %v485, 128
    %646 = vxpose.xlu0.b32.cont [8/16] %v486, 128
    %647 = vxpose.xlu0.b32.cont [9/16] %v487, 128
    %648 = vxpose.xlu0.b32.cont [10/16] %v488, 128
    %649 = vxpose.xlu0.b32.cont [11/16] %v489, 128
    %650 = vxpose.xlu0.b32.cont [12/16] %v490, 128
    %651 = vxpose.xlu0.b32.cont [13/16] %v491, 128
    %652 = vxpose.xlu0.b32.cont [14/16] %v492, 128
    %653 = vxpose.xlu0.b32.cont [15/16] %v493, 128
    %654 = vxpose.xlu0.b32.end [16/16] %v494, 128
    %v655 = vpop.trf.xlu0
    %v656 = vpop.trf.xlu0
    %v657 = vpop.trf.xlu0
    %v658 = vpop.trf.xlu0
    %v659 = vpop.trf.xlu0
    %v660 = vpop.trf.xlu0
    %v661 = vpop.trf.xlu0
    %v662 = vpop.trf.xlu0
    %v663 = vpop.trf.xlu0
    %v664 = vpop.trf.xlu0
    %v665 = vpop.trf.xlu0
    %v666 = vpop.trf.xlu0
    %v667 = vpop.trf.xlu0
    %v668 = vpop.trf.xlu0
    %v669 = vpop.trf.xlu0
    %v670 = vpop.trf.xlu0
    %671 = vxpose.xlu0.b32.start [1/16] %v495, 128
    %672 = vxpose.xlu0.b32.cont [2/16] %v496, 128
    %673 = vxpose.xlu0.b32.cont [3/16] %v497, 128
    %674 = vxpose.xlu0.b32.cont [4/16] %v498, 128
    %675 = vxpose.xlu0.b32.cont [5/16] %v499, 128
    %676 = vxpose.xlu0.b32.cont [6/16] %v500, 128
    %677 = vxpose.xlu0.b32.cont [7/16] %v501, 128
    %678 = vxpose.xlu0.b32.cont [8/16] %v502, 128
    %679 = vxpose.xlu0.b32.cont [9/16] %v503, 128
    %680 = vxpose.xlu0.b32.cont [10/16] %v504, 128
    %681 = vxpose.xlu0.b32.cont [11/16] %v505, 128
    %682 = vxpose.xlu0.b32.cont [12/16] %v506, 128
    %683 = vxpose.xlu0.b32.cont [13/16] %v507, 128
    %684 = vxpose.xlu0.b32.cont [14/16] %v508, 128
    %685 = vxpose.xlu0.b32.cont [15/16] %v509, 128
    %686 = vxpose.xlu0.b32.end [16/16] %v510, 128
    %v687 = vpop.trf.xlu0
    %v688 = vpop.trf.xlu0
    %v689 = vpop.trf.xlu0
    %v690 = vpop.trf.xlu0
    %v691 = vpop.trf.xlu0
    %v692 = vpop.trf.xlu0
    %v693 = vpop.trf.xlu0
    %v694 = vpop.trf.xlu0
    %v695 = vpop.trf.xlu0
    %v696 = vpop.trf.xlu0
    %v697 = vpop.trf.xlu0
    %v698 = vpop.trf.xlu0
    %v699 = vpop.trf.xlu0
    %v700 = vpop.trf.xlu0
    %v701 = vpop.trf.xlu0
    %v702 = vpop.trf.xlu0
    %703 = vxpose.xlu0.b32.start [1/16] %v511, 128
    %704 = vxpose.xlu0.b32.cont [2/16] %v512, 128
    %705 = vxpose.xlu0.b32.cont [3/16] %v513, 128
    %706 = vxpose.xlu0.b32.cont [4/16] %v514, 128
    %707 = vxpose.xlu0.b32.cont [5/16] %v515, 128
    %708 = vxpose.xlu0.b32.cont [6/16] %v516, 128
    %709 = vxpose.xlu0.b32.cont [7/16] %v517, 128
    %710 = vxpose.xlu0.b32.cont [8/16] %v518, 128
    %711 = vxpose.xlu0.b32.cont [9/16] %v519, 128
    %712 = vxpose.xlu0.b32.cont [10/16] %v520, 128
    %713 = vxpose.xlu0.b32.cont [11/16] %v521, 128
    %714 = vxpose.xlu0.b32.cont [12/16] %v522, 128
    %715 = vxpose.xlu0.b32.cont [13/16] %v523, 128
    %716 = vxpose.xlu0.b32.cont [14/16] %v524, 128
    %717 = vxpose.xlu0.b32.cont [15/16] %v525, 128
    %718 = vxpose.xlu0.b32.end [16/16] %v526, 128
    %v719 = vpop.trf.xlu0
    %v720 = vpop.trf.xlu0
    %v721 = vpop.trf.xlu0
    %v722 = vpop.trf.xlu0
    %v723 = vpop.trf.xlu0
    %v724 = vpop.trf.xlu0
    %v725 = vpop.trf.xlu0
    %v726 = vpop.trf.xlu0
    %v727 = vpop.trf.xlu0
    %v728 = vpop.trf.xlu0
    %v729 = vpop.trf.xlu0
    %v730 = vpop.trf.xlu0
    %v731 = vpop.trf.xlu0
    %v732 = vpop.trf.xlu0
    %v733 = vpop.trf.xlu0
    %v734 = vpop.trf.xlu0
    %735 = vxpose.xlu0.b32.start [1/16] %v527, 128
    %736 = vxpose.xlu0.b32.cont [2/16] %v528, 128
    %737 = vxpose.xlu0.b32.cont [3/16] %v529, 128
    %738 = vxpose.xlu0.b32.cont [4/16] %v530, 128
    %739 = vxpose.xlu0.b32.cont [5/16] %v531, 128
    %740 = vxpose.xlu0.b32.cont [6/16] %v532, 128
    %741 = vxpose.xlu0.b32.cont [7/16] %v533, 128
    %742 = vxpose.xlu0.b32.cont [8/16] %v534, 128
    %743 = vxpose.xlu0.b32.cont [9/16] %v535, 128
    %744 = vxpose.xlu0.b32.cont [10/16] %v536, 128
    %745 = vxpose.xlu0.b32.cont [11/16] %v537, 128
    %746 = vxpose.xlu0.b32.cont [12/16] %v538, 128
    %747 = vxpose.xlu0.b32.cont [13/16] %v539, 128
    %748 = vxpose.xlu0.b32.cont [14/16] %v540, 128
    %749 = vxpose.xlu0.b32.cont [15/16] %v541, 128
    %750 = vxpose.xlu0.b32.end [16/16] %v542, 128
    %v751 = vpop.trf.xlu0
    %v752 = vpop.trf.xlu0
    %v753 = vpop.trf.xlu0
    %v754 = vpop.trf.xlu0
    %v755 = vpop.trf.xlu0
    %v756 = vpop.trf.xlu0
    %v757 = vpop.trf.xlu0
    %v758 = vpop.trf.xlu0
    %v759 = vpop.trf.xlu0
    %v760 = vpop.trf.xlu0
    %v761 = vpop.trf.xlu0
    %v762 = vpop.trf.xlu0
    %v763 = vpop.trf.xlu0
    %v764 = vpop.trf.xlu0
    %v765 = vpop.trf.xlu0
    %v766 = vpop.trf.xlu0
    %767 = vxpose.xlu0.b32.start [1/16] %v543, 128
    %768 = vxpose.xlu0.b32.cont [2/16] %v544, 128
    %769 = vxpose.xlu0.b32.cont [3/16] %v545, 128
    %770 = vxpose.xlu0.b32.cont [4/16] %v546, 128
    %771 = vxpose.xlu0.b32.cont [5/16] %v547, 128
    %772 = vxpose.xlu0.b32.cont [6/16] %v548, 128
    %773 = vxpose.xlu0.b32.cont [7/16] %v549, 128
    %774 = vxpose.xlu0.b32.cont [8/16] %v550, 128
    %775 = vxpose.xlu0.b32.cont [9/16] %v551, 128
    %776 = vxpose.xlu0.b32.cont [10/16] %v552, 128
    %777 = vxpose.xlu0.b32.cont [11/16] %v553, 128
    %778 = vxpose.xlu0.b32.cont [12/16] %v554, 128
    %779 = vxpose.xlu0.b32.cont [13/16] %v555, 128
    %780 = vxpose.xlu0.b32.cont [14/16] %v556, 128
    %781 = vxpose.xlu0.b32.cont [15/16] %v557, 128
    %782 = vxpose.xlu0.b32.end [16/16] %v558, 128
    %v783 = vpop.trf.xlu0
    %v784 = vpop.trf.xlu0
    %v785 = vpop.trf.xlu0
    %v786 = vpop.trf.xlu0
    %v787 = vpop.trf.xlu0
    %v788 = vpop.trf.xlu0
    %v789 = vpop.trf.xlu0
    %v790 = vpop.trf.xlu0
    %v791 = vpop.trf.xlu0
    %v792 = vpop.trf.xlu0
    %v793 = vpop.trf.xlu0
    %v794 = vpop.trf.xlu0
    %v795 = vpop.trf.xlu0
    %v796 = vpop.trf.xlu0
    %v797 = vpop.trf.xlu0
    %v798 = vpop.trf.xlu0
    %799 = vxpose.xlu0.b32.start [1/16] %v559, 128
    %800 = vxpose.xlu0.b32.cont [2/16] %v560, 128
    %801 = vxpose.xlu0.b32.cont [3/16] %v561, 128
    %802 = vxpose.xlu0.b32.cont [4/16] %v562, 128
    %803 = vxpose.xlu0.b32.cont [5/16] %v563, 128
    %804 = vxpose.xlu0.b32.cont [6/16] %v564, 128
    %805 = vxpose.xlu0.b32.cont [7/16] %v565, 128
    %806 = vxpose.xlu0.b32.cont [8/16] %v566, 128
    %807 = vxpose.xlu0.b32.cont [9/16] %v567, 128
    %808 = vxpose.xlu0.b32.cont [10/16] %v568, 128
    %809 = vxpose.xlu0.b32.cont [11/16] %v569, 128
    %810 = vxpose.xlu0.b32.cont [12/16] %v570, 128
    %811 = vxpose.xlu0.b32.cont [13/16] %v571, 128
    %812 = vxpose.xlu0.b32.cont [14/16] %v572, 128
    %813 = vxpose.xlu0.b32.cont [15/16] %v573, 128
    %814 = vxpose.xlu0.b32.end [16/16] %v574, 128
    %v815 = vpop.trf.xlu0
    %v816 = vpop.trf.xlu0
    %v817 = vpop.trf.xlu0
    %v818 = vpop.trf.xlu0
    %v819 = vpop.trf.xlu0
    %v820 = vpop.trf.xlu0
    %v821 = vpop.trf.xlu0
    %v822 = vpop.trf.xlu0
    %v823 = vpop.trf.xlu0
    %v824 = vpop.trf.xlu0
    %v825 = vpop.trf.xlu0
    %v826 = vpop.trf.xlu0
    %v827 = vpop.trf.xlu0
    %v828 = vpop.trf.xlu0
    %v829 = vpop.trf.xlu0
    %v830 = vpop.trf.xlu0
    %s831 = scalar_lea.vmem [#allocation2], 256
    %832 = vst [vmem:[%s831] sm:$0xff] %v591
    %833 = vst [vmem:[%s831 + $0x8] sm:$0xff] %v623
    %834 = vst [vmem:[%s831 + $0x10] sm:$0xff] %v655
    %835 = vst [vmem:[%s831 + $0x18] sm:$0xff] %v687
    %836 = vst [vmem:[%s831 + $0x20] sm:$0xff] %v719
    %837 = vst [vmem:[%s831 + $0x28] sm:$0xff] %v751
    %838 = vst [vmem:[%s831 + $0x30] sm:$0xff] %v783
    %839 = vst [vmem:[%s831 + $0x38] sm:$0xff] %v815
    %840 = vst [vmem:[%s831 + $0x40] sm:$0xff] %v592
    %841 = vst [vmem:[%s831 + $0x48] sm:$0xff] %v624
    %842 = vst [vmem:[%s831 + $0x50] sm:$0xff] %v656
    %843 = vst [vmem:[%s831 + $0x58] sm:$0xff] %v688
    %844 = vst [vmem:[%s831 + $0x60] sm:$0xff] %v720
    %845 = vst [vmem:[%s831 + $0x68] sm:$0xff] %v752
    %846 = vst [vmem:[%s831 + $0x70] sm:$0xff] %v784
    %847 = vst [vmem:[%s831 + $0x78] sm:$0xff] %v816
    %848 = vst [vmem:[%s831 + $0x80] sm:$0xff] %v593
    %849 = vst [vmem:[%s831 + $0x88] sm:$0xff] %v625
    %850 = vst [vmem:[%s831 + $0x90] sm:$0xff] %v657
    %851 = vst [vmem:[%s831 + $0x98] sm:$0xff] %v689
    %852 = vst [vmem:[%s831 + $0xa0] sm:$0xff] %v721
    %853 = vst [vmem:[%s831 + $0xa8] sm:$0xff] %v753
    %854 = vst [vmem:[%s831 + $0xb0] sm:$0xff] %v785
    %855 = vst [vmem:[%s831 + $0xb8] sm:$0xff] %v817
    %856 = vst [vmem:[%s831 + $0xc0] sm:$0xff] %v594
    %857 = vst [vmem:[%s831 + $0xc8] sm:$0xff] %v626
    %858 = vst [vmem:[%s831 + $0xd0] sm:$0xff] %v658
    %859 = vst [vmem:[%s831 + $0xd8] sm:$0xff] %v690
    %860 = vst [vmem:[%s831 + $0xe0] sm:$0xff] %v722
    %861 = vst [vmem:[%s831 + $0xe8] sm:$0xff] %v754
    %862 = vst [vmem:[%s831 + $0xf0] sm:$0xff] %v786
    %863 = vst [vmem:[%s831 + $0xf8] sm:$0xff] %v818
    // Predicated region
    $region6: #{tpu_custom_call.1} parent=1 // pred_check
      _
    $region7: #{tpu_custom_call.1} parent=1 // pred_check_branch
      %865 = sbr.rel (0) target = $region9
    $region8: #{tpu_custom_call.1} parent=1 // pred_region
      %s866 = smul.u32 2, %s5
      %s868 = ssub.s32 8192, 8192
      %869 = vsyncadd [#allocation3], %s868
      %s870 = smul.addr %s866, 32
      %s871 = smul.addr %s870, 128
      %s872 = scalar_lea.hbm %s1, %s871
      %s873 = sshll.u32 [#allocation2], 4
      %s874 = int_to_ptr.vmem [resolvable:$true] %s873
      %879 = dma.vmem_to_hbm [thread:$0]  %s874, 8192, %s872, [#allocation3], 1024, 1024, 64
    $region9: #{tpu_custom_call.1} parent=1 // pred_fallthru
      _
    // Predicated region
    $region10: #{tpu_custom_call.1} parent=1 // pred_check
      _
    $region11: #{tpu_custom_call.1} parent=1 // pred_check_branch
      %881 = sbr.rel (0) target = $region13
    $region12: #{tpu_custom_call.1} parent=1 // pred_region
      %882 = dma.done [#allocation3], 8192
    $region13: #{tpu_custom_call.1} parent=1 // pred_fallthru
      _
    %883 = vsyncpa [#allocation3], 1

// kernel: tpu_custom_call.1
$region0: #{tpu_custom_call.1}
  #allocation0 [shape = 'u32[]', space=smem, size = 0x4, offset = 0x4, fixed_abs, tag = 'smem constant byte address 0x4 - core index']
  #allocation1 [shape = 'u32[144,128]{1,0:T(1,128)}', space=vmem, size = 0x12000, scoped, tag = 'internal scratch']
  %s0 = inlined_call_operand.vmem [shape: f32[2,1024,32], index: 0, kind: input, shape index: {}]
  %s1 = inlined_call_operand.hbm [shape: f32[2,32,1024], index: 1, kind: output, shape index: {}]
  %s2 = sld [smem:[#allocation0]]
  $region14: #{tpu_custom_call.1} parent=0
    _
  %s4 = ssub.s32 1, %s2
  %s5 = scalar_select 0, %s4, %s2
  $region1: #{tpu_custom_call.1} parent=0
    #allocation2 [shape = 'u8[262144]{0}', space=vmem, size = 0x40000, scoped, tag = 'output window, operand 0, single buffered']
    #allocation3 [shape = 's32[1]{0}', space=sflag, size = 0x4, scoped, tag = 'scoped memory for tpu_custom_call.1']
    %6 = vsyncpa [#allocation3], 0
    // Predicated region
    $region2: #{tpu_custom_call.1} parent=1 // pred_check
      _
    $region3: #{tpu_custom_call.1} parent=1 // pred_check_branch
      %8 = sbr.rel (0) target = $region5
    $region4: #{tpu_custom_call.1} parent=1 // pred_region
      _
    $region5: #{tpu_custom_call.1} parent=1 // pred_fallthru
      _
    %v9 = vld [vmem:[%s0] sm:$0xff]
    %v10 = vld [vmem:[%s0 + $0x8] sm:$0xff]
    %v11 = vld [vmem:[%s0 + $0x10] sm:$0xff]
    %v12 = vld [vmem:[%s0 + $0x18] sm:$0xff]
    %v13 = vld [vmem:[%s0 + $0x20] sm:$0xff]
    %v14 = vld [vmem:[%s0 + $0x28] sm:$0xff]
    %v15 = vld [vmem:[%s0 + $0x30] sm:$0xff]
    %v16 = vld [vmem:[%s0 + $0x38] sm:$0xff]
    %v17 = vld [vmem:[%s0 + $0x40] sm:$0xff]
    %v18 = vld [vmem:[%s0 + $0x48] sm:$0xff]
    %v19 = vld [vmem:[%s0 + $0x50] sm:$0xff]
    %v20 = vld [vmem:[%s0 + $0x58] sm:$0xff]
    %v21 = vld [vmem:[%s0 + $0x60] sm:$0xff]
    %v22 = vld [vmem:[%s0 + $0x68] sm:$0xff]
    %v23 = vld [vmem:[%s0 + $0x70] sm:$0xff]
    %v24 = vld [vmem:[%s0 + $0x78] sm:$0xff]
    %v25 = vld [vmem:[%s0 + $0x80] sm:$0xff]
    %v26 = vld [vmem:[%s0 + $0x88] sm:$0xff]
    %v27 = vld [vmem:[%s0 + $0x90] sm:$0xff]
    %v28 = vld [vmem:[%s0 + $0x98] sm:$0xff]
    %v29 = vld [vmem:[%s0 + $0xa0] sm:$0xff]
    %v30 = vld [vmem:[%s0 + $0xa8] sm:$0xff]
    %v31 = vld [vmem:[%s0 + $0xb0] sm:$0xff]
    %v32 = vld [vmem:[%s0 + $0xb8] sm:$0xff]
    %v33 = vld [vmem:[%s0 + $0xc0] sm:$0xff]
    %v34 = vld [vmem:[%s0 + $0xc8] sm:$0xff]
    %v35 = vld [vmem:[%s0 + $0xd0] sm:$0xff]
    %v36 = vld [vmem:[%s0 + $0xd8] sm:$0xff]
    %v37 = vld [vmem:[%s0 + $0xe0] sm:$0xff]
    %v38 = vld [vmem:[%s0 + $0xe8] sm:$0xff]
    %v39 = vld [vmem:[%s0 + $0xf0] sm:$0xff]
    %v40 = vld [vmem:[%s0 + $0xf8] sm:$0xff]
    %v41 = vld [vmem:[%s0 + $0x100] sm:$0xff]
    %v42 = vld [vmem:[%s0 + $0x108] sm:$0xff]
    %v43 = vld [vmem:[%s0 + $0x110] sm:$0xff]
    %v44 = vld [vmem:[%s0 + $0x118] sm:$0xff]
    %v45 = vld [vmem:[%s0 + $0x120] sm:$0xff]
    %v46 = vld [vmem:[%s0 + $0x128] sm:$0xff]
    %v47 = vld [vmem:[%s0 + $0x130] sm:$0xff]
    %v48 = vld [vmem:[%s0 + $0x138] sm:$0xff]
    %v49 = vld [vmem:[%s0 + $0x140] sm:$0xff]
    %v50 = vld [vmem:[%s0 + $0x148] sm:$0xff]
    %v51 = vld [vmem:[%s0 + $0x150] sm:$0xff]
    %v52 = vld [vmem:[%s0 + $0x158] sm:$0xff]
    %v53 = vld [vmem:[%s0 + $0x160] sm:$0xff]
    %v54 = vld [vmem:[%s0 + $0x168] sm:$0xff]
    %v55 = vld [vmem:[%s0 + $0x170] sm:$0xff]
    %v56 = vld [vmem:[%s0 + $0x178] sm:$0xff]
    %v57 = vld [vmem:[%s0 + $0x180] sm:$0xff]
    %v58 = vld [vmem:[%s0 + $0x188] sm:$0xff]
    %v59 = vld [vmem:[%s0 + $0x190] sm:$0xff]
    %v60 = vld [vmem:[%s0 + $0x198] sm:$0xff]
    %v61 = vld [vmem:[%s0 + $0x1a0] sm:$0xff]
    %v62 = vld [vmem:[%s0 + $0x1a8] sm:$0xff]
    %v63 = vld [vmem:[%s0 + $0x1b0] sm:$0xff]
    %v64 = vld [vmem:[%s0 + $0x1b8] sm:$0xff]
    %v65 = vld [vmem:[%s0 + $0x1c0] sm:$0xff]
    %v66 = vld [vmem:[%s0 + $0x1c8] sm:$0xff]
    %v67 = vld [vmem:[%s0 + $0x1d0] sm:$0xff]
    %v68 = vld [vmem:[%s0 + $0x1d8] sm:$0xff]
    %v69 = vld [vmem:[%s0 + $0x1e0] sm:$0xff]
    %v70 = vld [vmem:[%s0 + $0x1e8] sm:$0xff]
    %v71 = vld [vmem:[%s0 + $0x1f0] sm:$0xff]
    %v72 = vld [vmem:[%s0 + $0x1f8] sm:$0xff]
    %v73 = vld [vmem:[%s0 + $0x200] sm:$0xff]
    %v74 = vld [vmem:[%s0 + $0x208] sm:$0xff]
    %v75 = vld [vmem:[%s0 + $0x210] sm:$0xff]
    %v76 = vld [vmem:[%s0 + $0x218] sm:$0xff]
    %v77 = vld [vmem:[%s0 + $0x220] sm:$0xff]
    %v78 = vld [vmem:[%s0 + $0x228] sm:$0xff]
    %v79 = vld [vmem:[%s0 + $0x230] sm:$0xff]
    %v80 = vld [vmem:[%s0 + $0x238] sm:$0xff]
    %v81 = vld [vmem:[%s0 + $0x240] sm:$0xff]
    %v82 = vld [vmem:[%s0 + $0x248] sm:$0xff]
    %v83 = vld [vmem:[%s0 + $0x250] sm:$0xff]
    %v84 = vld [vmem:[%s0 + $0x258] sm:$0xff]
    %v85 = vld [vmem:[%s0 + $0x260] sm:$0xff]
    %v86 = vld [vmem:[%s0 + $0x268] sm:$0xff]
    %v87 = vld [vmem:[%s0 + $0x270] sm:$0xff]
    %v88 = vld [vmem:[%s0 + $0x278] sm:$0xff]
    %v89 = vld [vmem:[%s0 + $0x280] sm:$0xff]
    %v90 = vld [vmem:[%s0 + $0x288] sm:$0xff]
    %v91 = vld [vmem:[%s0 + $0x290] sm:$0xff]
    %v92 = vld [vmem:[%s0 + $0x298] sm:$0xff]
    %v93 = vld [vmem:[%s0 + $0x2a0] sm:$0xff]
    %v94 = vld [vmem:[%s0 + $0x2a8] sm:$0xff]
    %v95 = vld [vmem:[%s0 + $0x2b0] sm:$0xff]
    %v96 = vld [vmem:[%s0 + $0x2b8] sm:$0xff]
    %v97 = vld [vmem:[%s0 + $0x2c0] sm:$0xff]
    %v98 = vld [vmem:[%s0 + $0x2c8] sm:$0xff]
    %v99 = vld [vmem:[%s0 + $0x2d0] sm:$0xff]
    %v100 = vld [vmem:[%s0 + $0x2d8] sm:$0xff]
    %v101 = vld [vmem:[%s0 + $0x2e0] sm:$0xff]
    %v102 = vld [vmem:[%s0 + $0x2e8] sm:$0xff]
    %v103 = vld [vmem:[%s0 + $0x2f0] sm:$0xff]
    %v104 = vld [vmem:[%s0 + $0x2f8] sm:$0xff]
    %v105 = vld [vmem:[%s0 + $0x300] sm:$0xff]
    %v106 = vld [vmem:[%s0 + $0x308] sm:$0xff]
    %v107 = vld [vmem:[%s0 + $0x310] sm:$0xff]
    %v108 = vld [vmem:[%s0 + $0x318] sm:$0xff]
    %v109 = vld [vmem:[%s0 + $0x320] sm:$0xff]
    %v110 = vld [vmem:[%s0 + $0x328] sm:$0xff]
    %v111 = vld [vmem:[%s0 + $0x330] sm:$0xff]
    %v112 = vld [vmem:[%s0 + $0x338] sm:$0xff]
    %v113 = vld [vmem:[%s0 + $0x340] sm:$0xff]
    %v114 = vld [vmem:[%s0 + $0x348] sm:$0xff]
    %v115 = vld [vmem:[%s0 + $0x350] sm:$0xff]
    %v116 = vld [vmem:[%s0 + $0x358] sm:$0xff]
    %v117 = vld [vmem:[%s0 + $0x360] sm:$0xff]
    %v118 = vld [vmem:[%s0 + $0x368] sm:$0xff]
    %v119 = vld [vmem:[%s0 + $0x370] sm:$0xff]
    %v120 = vld [vmem:[%s0 + $0x378] sm:$0xff]
    %v121 = vld [vmem:[%s0 + $0x380] sm:$0xff]
    %v122 = vld [vmem:[%s0 + $0x388] sm:$0xff]
    %v123 = vld [vmem:[%s0 + $0x390] sm:$0xff]
    %v124 = vld [vmem:[%s0 + $0x398] sm:$0xff]
    %v125 = vld [vmem:[%s0 + $0x3a0] sm:$0xff]
    %v126 = vld [vmem:[%s0 + $0x3a8] sm:$0xff]
    %v127 = vld [vmem:[%s0 + $0x3b0] sm:$0xff]
    %v128 = vld [vmem:[%s0 + $0x3b8] sm:$0xff]
    %v129 = vld [vmem:[%s0 + $0x3c0] sm:$0xff]
    %v130 = vld [vmem:[%s0 + $0x3c8] sm:$0xff]
    %v131 = vld [vmem:[%s0 + $0x3d0] sm:$0xff]
    %v132 = vld [vmem:[%s0 + $0x3d8] sm:$0xff]
    %v133 = vld [vmem:[%s0 + $0x3e0] sm:$0xff]
    %v134 = vld [vmem:[%s0 + $0x3e8] sm:$0xff]
    %v135 = vld [vmem:[%s0 + $0x3f0] sm:$0xff]
    %v136 = vld [vmem:[%s0 + $0x3f8] sm:$0xff]
    %137 = vxpose.xlu0.b32.start [1/16] %v9, 128
    %138 = vxpose.xlu0.b32.cont [2/16] %v10, 128
    %139 = vxpose.xlu0.b32.cont [3/16] %v11, 128
    %140 = vxpose.xlu0.b32.cont [4/16] %v12, 128
    %141 = vxpose.xlu0.b32.cont [5/16] %v13, 128
    %142 = vxpose.xlu0.b32.cont [6/16] %v14, 128
    %143 = vxpose.xlu0.b32.cont [7/16] %v15, 128
    %144 = vxpose.xlu0.b32.cont [8/16] %v16, 128
    %145 = vxpose.xlu0.b32.cont [9/16] %v17, 128
    %146 = vxpose.xlu0.b32.cont [10/16] %v18, 128
    %147 = vxpose.xlu0.b32.cont [11/16] %v19, 128
    %148 = vxpose.xlu0.b32.cont [12/16] %v20, 128
    %149 = vxpose.xlu0.b32.cont [13/16] %v21, 128
    %150 = vxpose.xlu0.b32.cont [14/16] %v22, 128
    %151 = vxpose.xlu0.b32.cont [15/16] %v23, 128
    %152 = vxpose.xlu0.b32.end [16/16] %v24, 128
    %v153 = vpop.trf.xlu0
    %v154 = vpop.trf.xlu0
    %v155 = vpop.trf.xlu0
    %v156 = vpop.trf.xlu0
    %v157 = vpop.trf.xlu0
    %v158 = vpop.trf.xlu0
    %v159 = vpop.trf.xlu0
    %v160 = vpop.trf.xlu0
    %v161 = vpop.trf.xlu0
    %v162 = vpop.trf.xlu0
    %v163 = vpop.trf.xlu0
    %v164 = vpop.trf.xlu0
    %v165 = vpop.trf.xlu0
    %v166 = vpop.trf.xlu0
    %v167 = vpop.trf.xlu0
    %v168 = vpop.trf.xlu0
    %169 = vxpose.xlu0.b32.start [1/16] %v25, 128
    %170 = vxpose.xlu0.b32.cont [2/16] %v26, 128
    %171 = vxpose.xlu0.b32.cont [3/16] %v27, 128
    %172 = vxpose.xlu0.b32.cont [4/16] %v28, 128
    %173 = vxpose.xlu0.b32.cont [5/16] %v29, 128
    %174 = vxpose.xlu0.b32.cont [6/16] %v30, 128
    %175 = vxpose.xlu0.b32.cont [7/16] %v31, 128
    %176 = vxpose.xlu0.b32.cont [8/16] %v32, 128
    %177 = vxpose.xlu0.b32.cont [9/16] %v33, 128
    %178 = vxpose.xlu0.b32.cont [10/16] %v34, 128
    %179 = vxpose.xlu0.b32.cont [11/16] %v35, 128
    %180 = vxpose.xlu0.b32.cont [12/16] %v36, 128
    %181 = vxpose.xlu0.b32.cont [13/16] %v37, 128
    %182 = vxpose.xlu0.b32.cont [14/16] %v38, 128
    %183 = vxpose.xlu0.b32.cont [15/16] %v39, 128
    %184 = vxpose.xlu0.b32.end [16/16] %v40, 128
    %v185 = vpop.trf.xlu0
    %v186 = vpop.trf.xlu0
    %v187 = vpop.trf.xlu0
    %v188 = vpop.trf.xlu0
    %v189 = vpop.trf.xlu0
    %v190 = vpop.trf.xlu0
    %v191 = vpop.trf.xlu0
    %v192 = vpop.trf.xlu0
    %v193 = vpop.trf.xlu0
    %v194 = vpop.trf.xlu0
    %v195 = vpop.trf.xlu0
    %v196 = vpop.trf.xlu0
    %v197 = vpop.trf.xlu0
    %v198 = vpop.trf.xlu0
    %v199 = vpop.trf.xlu0
    %v200 = vpop.trf.xlu0
    %201 = vxpose.xlu0.b32.start [1/16] %v41, 128
    %202 = vxpose.xlu0.b32.cont [2/16] %v42, 128
    %203 = vxpose.xlu0.b32.cont [3/16] %v43, 128
    %204 = vxpose.xlu0.b32.cont [4/16] %v44, 128
    %205 = vxpose.xlu0.b32.cont [5/16] %v45, 128
    %206 = vxpose.xlu0.b32.cont [6/16] %v46, 128
    %207 = vxpose.xlu0.b32.cont [7/16] %v47, 128
    %208 = vxpose.xlu0.b32.cont [8/16] %v48, 128
    %209 = vxpose.xlu0.b32.cont [9/16] %v49, 128
    %210 = vxpose.xlu0.b32.cont [10/16] %v50, 128
    %211 = vxpose.xlu0.b32.cont [11/16] %v51, 128
    %212 = vxpose.xlu0.b32.cont [12/16] %v52, 128
    %213 = vxpose.xlu0.b32.cont [13/16] %v53, 128
    %214 = vxpose.xlu0.b32.cont [14/16] %v54, 128
    %215 = vxpose.xlu0.b32.cont [15/16] %v55, 128
    %216 = vxpose.xlu0.b32.end [16/16] %v56, 128
    %v217 = vpop.trf.xlu0
    %v218 = vpop.trf.xlu0
    %v219 = vpop.trf.xlu0
    %v220 = vpop.trf.xlu0
    %v221 = vpop.trf.xlu0
    %v222 = vpop.trf.xlu0
    %v223 = vpop.trf.xlu0
    %v224 = vpop.trf.xlu0
    %v225 = vpop.trf.xlu0
    %v226 = vpop.trf.xlu0
    %v227 = vpop.trf.xlu0
    %v228 = vpop.trf.xlu0
    %v229 = vpop.trf.xlu0
    %v230 = vpop.trf.xlu0
    %v231 = vpop.trf.xlu0
    %v232 = vpop.trf.xlu0
    %233 = vxpose.xlu0.b32.start [1/16] %v57, 128
    %234 = vxpose.xlu0.b32.cont [2/16] %v58, 128
    %235 = vxpose.xlu0.b32.cont [3/16] %v59, 128
    %236 = vxpose.xlu0.b32.cont [4/16] %v60, 128
    %237 = vxpose.xlu0.b32.cont [5/16] %v61, 128
    %238 = vxpose.xlu0.b32.cont [6/16] %v62, 128
    %239 = vxpose.xlu0.b32.cont [7/16] %v63, 128
    %240 = vxpose.xlu0.b32.cont [8/16] %v64, 128
    %241 = vxpose.xlu0.b32.cont [9/16] %v65, 128
    %242 = vxpose.xlu0.b32.cont [10/16] %v66, 128
    %243 = vxpose.xlu0.b32.cont [11/16] %v67, 128
    %244 = vxpose.xlu0.b32.cont [12/16] %v68, 128
    %245 = vxpose.xlu0.b32.cont [13/16] %v69, 128
    %246 = vxpose.xlu0.b32.cont [14/16] %v70, 128
    %247 = vxpose.xlu0.b32.cont [15/16] %v71, 128
    %248 = vxpose.xlu0.b32.end [16/16] %v72, 128
    %v249 = vpop.trf.xlu0
    %v250 = vpop.trf.xlu0
    %v251 = vpop.trf.xlu0
    %v252 = vpop.trf.xlu0
    %v253 = vpop.trf.xlu0
    %v254 = vpop.trf.xlu0
    %v255 = vpop.trf.xlu0
    %v256 = vpop.trf.xlu0
    %v257 = vpop.trf.xlu0
    %v258 = vpop.trf.xlu0
    %v259 = vpop.trf.xlu0
    %v260 = vpop.trf.xlu0
    %v261 = vpop.trf.xlu0
    %v262 = vpop.trf.xlu0
    %v263 = vpop.trf.xlu0
    %v264 = vpop.trf.xlu0
    %265 = vxpose.xlu0.b32.start [1/16] %v73, 128
    %266 = vxpose.xlu0.b32.cont [2/16] %v74, 128
    %267 = vxpose.xlu0.b32.cont [3/16] %v75, 128
    %268 = vxpose.xlu0.b32.cont [4/16] %v76, 128
    %269 = vxpose.xlu0.b32.cont [5/16] %v77, 128
    %270 = vxpose.xlu0.b32.cont [6/16] %v78, 128
    %271 = vxpose.xlu0.b32.cont [7/16] %v79, 128
    %272 = vxpose.xlu0.b32.cont [8/16] %v80, 128
    %273 = vxpose.xlu0.b32.cont [9/16] %v81, 128
    %274 = vxpose.xlu0.b32.cont [10/16] %v82, 128
    %275 = vxpose.xlu0.b32.cont [11/16] %v83, 128
    %276 = vxpose.xlu0.b32.cont [12/16] %v84, 128
    %277 = vxpose.xlu0.b32.cont [13/16] %v85, 128
    %278 = vxpose.xlu0.b32.cont [14/16] %v86, 128
    %279 = vxpose.xlu0.b32.cont [15/16] %v87, 128
    %280 = vxpose.xlu0.b32.end [16/16] %v88, 128
    %v281 = vpop.trf.xlu0
    %v282 = vpop.trf.xlu0
    %v283 = vpop.trf.xlu0
    %v284 = vpop.trf.xlu0
    %v285 = vpop.trf.xlu0
    %v286 = vpop.trf.xlu0
    %v287 = vpop.trf.xlu0
    %v288 = vpop.trf.xlu0
    %v289 = vpop.trf.xlu0
    %v290 = vpop.trf.xlu0
    %v291 = vpop.trf.xlu0
    %v292 = vpop.trf.xlu0
    %v293 = vpop.trf.xlu0
    %v294 = vpop.trf.xlu0
    %v295 = vpop.trf.xlu0
    %v296 = vpop.trf.xlu0
    %297 = vxpose.xlu0.b32.start [1/16] %v89, 128
    %298 = vxpose.xlu0.b32.cont [2/16] %v90, 128
    %299 = vxpose.xlu0.b32.cont [3/16] %v91, 128
    %300 = vxpose.xlu0.b32.cont [4/16] %v92, 128
    %301 = vxpose.xlu0.b32.cont [5/16] %v93, 128
    %302 = vxpose.xlu0.b32.cont [6/16] %v94, 128
    %303 = vxpose.xlu0.b32.cont [7/16] %v95, 128
    %304 = vxpose.xlu0.b32.cont [8/16] %v96, 128
    %305 = vxpose.xlu0.b32.cont [9/16] %v97, 128
    %306 = vxpose.xlu0.b32.cont [10/16] %v98, 128
    %307 = vxpose.xlu0.b32.cont [11/16] %v99, 128
    %308 = vxpose.xlu0.b32.cont [12/16] %v100, 128
    %309 = vxpose.xlu0.b32.cont [13/16] %v101, 128
    %310 = vxpose.xlu0.b32.cont [14/16] %v102, 128
    %311 = vxpose.xlu0.b32.cont [15/16] %v103, 128
    %312 = vxpose.xlu0.b32.end [16/16] %v104, 128
    %v313 = vpop.trf.xlu0
    %v314 = vpop.trf.xlu0
    %v315 = vpop.trf.xlu0
    %v316 = vpop.trf.xlu0
    %v317 = vpop.trf.xlu0
    %v318 = vpop.trf.xlu0
    %v319 = vpop.trf.xlu0
    %v320 = vpop.trf.xlu0
    %v321 = vpop.trf.xlu0
    %v322 = vpop.trf.xlu0
    %v323 = vpop.trf.xlu0
    %v324 = vpop.trf.xlu0
    %v325 = vpop.trf.xlu0
    %v326 = vpop.trf.xlu0
    %v327 = vpop.trf.xlu0
    %v328 = vpop.trf.xlu0
    %329 = vxpose.xlu0.b32.start [1/16] %v105, 128
    %330 = vxpose.xlu0.b32.cont [2/16] %v106, 128
    %331 = vxpose.xlu0.b32.cont [3/16] %v107, 128
    %332 = vxpose.xlu0.b32.cont [4/16] %v108, 128
    %333 = vxpose.xlu0.b32.cont [5/16] %v109, 128
    %334 = vxpose.xlu0.b32.cont [6/16] %v110, 128
    %335 = vxpose.xlu0.b32.cont [7/16] %v111, 128
    %336 = vxpose.xlu0.b32.cont [8/16] %v112, 128
    %337 = vxpose.xlu0.b32.cont [9/16] %v113, 128
    %338 = vxpose.xlu0.b32.cont [10/16] %v114, 128
    %339 = vxpose.xlu0.b32.cont [11/16] %v115, 128
    %340 = vxpose.xlu0.b32.cont [12/16] %v116, 128
    %341 = vxpose.xlu0.b32.cont [13/16] %v117, 128
    %342 = vxpose.xlu0.b32.cont [14/16] %v118, 128
    %343 = vxpose.xlu0.b32.cont [15/16] %v119, 128
    %344 = vxpose.xlu0.b32.end [16/16] %v120, 128
    %v345 = vpop.trf.xlu0
    %v346 = vpop.trf.xlu0
    %v347 = vpop.trf.xlu0
    %v348 = vpop.trf.xlu0
    %v349 = vpop.trf.xlu0
    %v350 = vpop.trf.xlu0
    %v351 = vpop.trf.xlu0
    %v352 = vpop.trf.xlu0
    %v353 = vpop.trf.xlu0
    %v354 = vpop.trf.xlu0
    %v355 = vpop.trf.xlu0
    %v356 = vpop.trf.xlu0
    %v357 = vpop.trf.xlu0
    %v358 = vpop.trf.xlu0
    %v359 = vpop.trf.xlu0
    %v360 = vpop.trf.xlu0
    %361 = vxpose.xlu0.b32.start [1/16] %v121, 128
    %362 = vxpose.xlu0.b32.cont [2/16] %v122, 128
    %363 = vxpose.xlu0.b32.cont [3/16] %v123, 128
    %364 = vxpose.xlu0.b32.cont [4/16] %v124, 128
    %365 = vxpose.xlu0.b32.cont [5/16] %v125, 128
    %366 = vxpose.xlu0.b32.cont [6/16] %v126, 128
    %367 = vxpose.xlu0.b32.cont [7/16] %v127, 128
    %368 = vxpose.xlu0.b32.cont [8/16] %v128, 128
    %369 = vxpose.xlu0.b32.cont [9/16] %v129, 128
    %370 = vxpose.xlu0.b32.cont [10/16] %v130, 128
    %371 = vxpose.xlu0.b32.cont [11/16] %v131, 128
    %372 = vxpose.xlu0.b32.cont [12/16] %v132, 128
    %373 = vxpose.xlu0.b32.cont [13/16] %v133, 128
    %374 = vxpose.xlu0.b32.cont [14/16] %v134, 128
    %375 = vxpose.xlu0.b32.cont [15/16] %v135, 128
    %376 = vxpose.xlu0.b32.end [16/16] %v136, 128
    %v377 = vpop.trf.xlu0
    %v378 = vpop.trf.xlu0
    %v379 = vpop.trf.xlu0
    %v380 = vpop.trf.xlu0
    %v381 = vpop.trf.xlu0
    %v382 = vpop.trf.xlu0
    %v383 = vpop.trf.xlu0
    %v384 = vpop.trf.xlu0
    %v385 = vpop.trf.xlu0
    %v386 = vpop.trf.xlu0
    %v387 = vpop.trf.xlu0
    %v388 = vpop.trf.xlu0
    %v389 = vpop.trf.xlu0
    %v390 = vpop.trf.xlu0
    %v391 = vpop.trf.xlu0
    %v392 = vpop.trf.xlu0
    %393 = vst [vmem:[#allocation2] sm:$0xff] %v153
    %394 = vst [vmem:[#allocation2 + $0x8] sm:$0xff] %v185
    %395 = vst [vmem:[#allocation2 + $0x10] sm:$0xff] %v217
    %396 = vst [vmem:[#allocation2 + $0x18] sm:$0xff] %v249
    %397 = vst [vmem:[#allocation2 + $0x20] sm:$0xff] %v281
    %398 = vst [vmem:[#allocation2 + $0x28] sm:$0xff] %v313
    %399 = vst [vmem:[#allocation2 + $0x30] sm:$0xff] %v345
    %400 = vst [vmem:[#allocation2 + $0x38] sm:$0xff] %v377
    %401 = vst [vmem:[#allocation2 + $0x40] sm:$0xff] %v154
    %402 = vst [vmem:[#allocation2 + $0x48] sm:$0xff] %v186
    %403 = vst [vmem:[#allocation2 + $0x50] sm:$0xff] %v218
    %404 = vst [vmem:[#allocation2 + $0x58] sm:$0xff] %v250
    %405 = vst [vmem:[#allocation2 + $0x60] sm:$0xff] %v282
    %406 = vst [vmem:[#allocation2 + $0x68] sm:$0xff] %v314
    %407 = vst [vmem:[#allocation2 + $0x70] sm:$0xff] %v346
    %408 = vst [vmem:[#allocation2 + $0x78] sm:$0xff] %v378
    %409 = vst [vmem:[#allocation2 + $0x80] sm:$0xff] %v155
    %410 = vst [vmem:[#allocation2 + $0x88] sm:$0xff] %v187
    %411 = vst [vmem:[#allocation2 + $0x90] sm:$0xff] %v219
    %412 = vst [vmem:[#allocation2 + $0x98] sm:$0xff] %v251
    %413 = vst [vmem:[#allocation2 + $0xa0] sm:$0xff] %v283
    %414 = vst [vmem:[#allocation2 + $0xa8] sm:$0xff] %v315
    %415 = vst [vmem:[#allocation2 + $0xb0] sm:$0xff] %v347
    %416 = vst [vmem:[#allocation2 + $0xb8] sm:$0xff] %v379
    %417 = vst [vmem:[#allocation2 + $0xc0] sm:$0xff] %v156
    %418 = vst [vmem:[#allocation2 + $0xc8] sm:$0xff] %v188
    %419 = vst [vmem:[#allocation2 + $0xd0] sm:$0xff] %v220
    %420 = vst [vmem:[#allocation2 + $0xd8] sm:$0xff] %v252
    %421 = vst [vmem:[#allocation2 + $0xe0] sm:$0xff] %v284
    %422 = vst [vmem:[#allocation2 + $0xe8] sm:$0xff] %v316
    %423 = vst [vmem:[#allocation2 + $0xf0] sm:$0xff] %v348
    %424 = vst [vmem:[#allocation2 + $0xf8] sm:$0xff] %v380
    %s425 = scalar_lea.vmem %s0, 1024
    %v426 = vld [vmem:[%s425] sm:$0xff]
    %v427 = vld [vmem:[%s425 + $0x8] sm:$0xff]
    %v428 = vld [vmem:[%s425 + $0x10] sm:$0xff]
    %v429 = vld [vmem:[%s425 + $0x18] sm:$0xff]
    %v430 = vld [vmem:[%s425 + $0x20] sm:$0xff]
    %v431 = vld [vmem:[%s425 + $0x28] sm:$0xff]
    %v432 = vld [vmem:[%s425 + $0x30] sm:$0xff]
    %v433 = vld [vmem:[%s425 + $0x38] sm:$0xff]
    %v434 = vld [vmem:[%s425 + $0x40] sm:$0xff]
    %v435 = vld [vmem:[%s425 + $0x48] sm:$0xff]
    %v436 = vld [vmem:[%s425 + $0x50] sm:$0xff]
    %v437 = vld [vmem:[%s425 + $0x58] sm:$0xff]
    %v438 = vld [vmem:[%s425 + $0x60] sm:$0xff]
    %v439 = vld [vmem:[%s425 + $0x68] sm:$0xff]
    %v440 = vld [vmem:[%s425 + $0x70] sm:$0xff]
    %v441 = vld [vmem:[%s425 + $0x78] sm:$0xff]
    %v442 = vld [vmem:[%s425 + $0x80] sm:$0xff]
    %v443 = vld [vmem:[%s425 + $0x88] sm:$0xff]
    %v444 = vld [vmem:[%s425 + $0x90] sm:$0xff]
    %v445 = vld [vmem:[%s425 + $0x98] sm:$0xff]
    %v446 = vld [vmem:[%s425 + $0xa0] sm:$0xff]
    %v447 = vld [vmem:[%s425 + $0xa8] sm:$0xff]
    %v448 = vld [vmem:[%s425 + $0xb0] sm:$0xff]
    %v449 = vld [vmem:[%s425 + $0xb8] sm:$0xff]
    %v450 = vld [vmem:[%s425 + $0xc0] sm:$0xff]
    %v451 = vld [vmem:[%s425 + $0xc8] sm:$0xff]
    %v452 = vld [vmem:[%s425 + $0xd0] sm:$0xff]
    %v453 = vld [vmem:[%s425 + $0xd8] sm:$0xff]
    %v454 = vld [vmem:[%s425 + $0xe0] sm:$0xff]
    %v455 = vld [vmem:[%s425 + $0xe8] sm:$0xff]
    %v456 = vld [vmem:[%s425 + $0xf0] sm:$0xff]
    %v457 = vld [vmem:[%s425 + $0xf8] sm:$0xff]
    %v458 = vld [vmem:[%s425 + $0x100] sm:$0xff]
    %v459 = vld [vmem:[%s425 + $0x108] sm:$0xff]
    %v460 = vld [vmem:[%s425 + $0x110] sm:$0xff]
    %v461 = vld [vmem:[%s425 + $0x118] sm:$0xff]
    %v462 = vld [vmem:[%s425 + $0x120] sm:$0xff]
    %v463 = vld [vmem:[%s425 + $0x128] sm:$0xff]
    %v464 = vld [vmem:[%s425 + $0x130] sm:$0xff]
    %v465 = vld [vmem:[%s425 + $0x138] sm:$0xff]
    %v466 = vld [vmem:[%s425 + $0x140] sm:$0xff]
    %v467 = vld [vmem:[%s425 + $0x148] sm:$0xff]
    %v468 = vld [vmem:[%s425 + $0x150] sm:$0xff]
    %v469 = vld [vmem:[%s425 + $0x158] sm:$0xff]
    %v470 = vld [vmem:[%s425 + $0x160] sm:$0xff]
    %v471 = vld [vmem:[%s425 + $0x168] sm:$0xff]
    %v472 = vld [vmem:[%s425 + $0x170] sm:$0xff]
    %v473 = vld [vmem:[%s425 + $0x178] sm:$0xff]
    %v474 = vld [vmem:[%s425 + $0x180] sm:$0xff]
    %v475 = vld [vmem:[%s425 + $0x188] sm:$0xff]
    %v476 = vld [vmem:[%s425 + $0x190] sm:$0xff]
    %v477 = vld [vmem:[%s425 + $0x198] sm:$0xff]
    %v478 = vld [vmem:[%s425 + $0x1a0] sm:$0xff]
    %v479 = vld [vmem:[%s425 + $0x1a8] sm:$0xff]
    %v480 = vld [vmem:[%s425 + $0x1b0] sm:$0xff]
    %v481 = vld [vmem:[%s425 + $0x1b8] sm:$0xff]
    %v482 = vld [vmem:[%s425 + $0x1c0] sm:$0xff]
    %v483 = vld [vmem:[%s425 + $0x1c8] sm:$0xff]
    %v484 = vld [vmem:[%s425 + $0x1d0] sm:$0xff]
    %v485 = vld [vmem:[%s425 + $0x1d8] sm:$0xff]
    %v486 = vld [vmem:[%s425 + $0x1e0] sm:$0xff]
    %v487 = vld [vmem:[%s425 + $0x1e8] sm:$0xff]
    %v488 = vld [vmem:[%s425 + $0x1f0] sm:$0xff]
    %v489 = vld [vmem:[%s425 + $0x1f8] sm:$0xff]
    %v490 = vld [vmem:[%s425 + $0x200] sm:$0xff]
    %v491 = vld [vmem:[%s425 + $0x208] sm:$0xff]
    %v492 = vld [vmem:[%s425 + $0x210] sm:$0xff]
    %v493 = vld [vmem:[%s425 + $0x218] sm:$0xff]
    %v494 = vld [vmem:[%s425 + $0x220] sm:$0xff]
    %v495 = vld [vmem:[%s425 + $0x228] sm:$0xff]
    %v496 = vld [vmem:[%s425 + $0x230] sm:$0xff]
    %v497 = vld [vmem:[%s425 + $0x238] sm:$0xff]
    %v498 = vld [vmem:[%s425 + $0x240] sm:$0xff]
    %v499 = vld [vmem:[%s425 + $0x248] sm:$0xff]
    %v500 = vld [vmem:[%s425 + $0x250] sm:$0xff]
    %v501 = vld [vmem:[%s425 + $0x258] sm:$0xff]
    %v502 = vld [vmem:[%s425 + $0x260] sm:$0xff]
    %v503 = vld [vmem:[%s425 + $0x268] sm:$0xff]
    %v504 = vld [vmem:[%s425 + $0x270] sm:$0xff]
    %v505 = vld [vmem:[%s425 + $0x278] sm:$0xff]
    %v506 = vld [vmem:[%s425 + $0x280] sm:$0xff]
    %v507 = vld [vmem:[%s425 + $0x288] sm:$0xff]
    %v508 = vld [vmem:[%s425 + $0x290] sm:$0xff]
    %v509 = vld [vmem:[%s425 + $0x298] sm:$0xff]
    %v510 = vld [vmem:[%s425 + $0x2a0] sm:$0xff]
    %v511 = vld [vmem:[%s425 + $0x2a8] sm:$0xff]
    %v512 = vld [vmem:[%s425 + $0x2b0] sm:$0xff]
    %v513 = vld [vmem:[%s425 + $0x2b8] sm:$0xff]
    %v514 = vld [vmem:[%s425 + $0x2c0] sm:$0xff]
    %v515 = vld [vmem:[%s425 + $0x2c8] sm:$0xff]
    %v516 = vld [vmem:[%s425 + $0x2d0] sm:$0xff]
    %v517 = vld [vmem:[%s425 + $0x2d8] sm:$0xff]
    %v518 = vld [vmem:[%s425 + $0x2e0] sm:$0xff]
    %v519 = vld [vmem:[%s425 + $0x2e8] sm:$0xff]
    %v520 = vld [vmem:[%s425 + $0x2f0] sm:$0xff]
    %v521 = vld [vmem:[%s425 + $0x2f8] sm:$0xff]
    %v522 = vld [vmem:[%s425 + $0x300] sm:$0xff]
    %v523 = vld [vmem:[%s425 + $0x308] sm:$0xff]
    %v524 = vld [vmem:[%s425 + $0x310] sm:$0xff]
    %v525 = vld [vmem:[%s425 + $0x318] sm:$0xff]
    %v526 = vld [vmem:[%s425 + $0x320] sm:$0xff]
    %v527 = vld [vmem:[%s425 + $0x328] sm:$0xff]
    %v528 = vld [vmem:[%s425 + $0x330] sm:$0xff]
    %v529 = vld [vmem:[%s425 + $0x338] sm:$0xff]
    %v530 = vld [vmem:[%s425 + $0x340] sm:$0xff]
    %v531 = vld [vmem:[%s425 + $0x348] sm:$0xff]
    %v532 = vld [vmem:[%s425 + $0x350] sm:$0xff]
    %v533 = vld [vmem:[%s425 + $0x358] sm:$0xff]
    %v534 = vld [vmem:[%s425 + $0x360] sm:$0xff]
    %v535 = vld [vmem:[%s425 + $0x368] sm:$0xff]
    %v536 = vld [vmem:[%s425 + $0x370] sm:$0xff]
    %v537 = vld [vmem:[%s425 + $0x378] sm:$0xff]
    %v538 = vld [vmem:[%s425 + $0x380] sm:$0xff]
    %v539 = vld [vmem:[%s425 + $0x388] sm:$0xff]
    %v540 = vld [vmem:[%s425 + $0x390] sm:$0xff]
    %v541 = vld [vmem:[%s425 + $0x398] sm:$0xff]
    %v542 = vld [vmem:[%s425 + $0x3a0] sm:$0xff]
    %v543 = vld [vmem:[%s425 + $0x3a8] sm:$0xff]
    %v544 = vld [vmem:[%s425 + $0x3b0] sm:$0xff]
    %v545 = vld [vmem:[%s425 + $0x3b8] sm:$0xff]
    %v546 = vld [vmem:[%s425 + $0x3c0] sm:$0xff]
    %v547 = vld [vmem:[%s425 + $0x3c8] sm:$0xff]
    %v548 = vld [vmem:[%s425 + $0x3d0] sm:$0xff]
    %v549 = vld [vmem:[%s425 + $0x3d8] sm:$0xff]
    %v550 = vld [vmem:[%s425 + $0x3e0] sm:$0xff]
    %v551 = vld [vmem:[%s425 + $0x3e8] sm:$0xff]
    %v552 = vld [vmem:[%s425 + $0x3f0] sm:$0xff]
    %v553 = vld [vmem:[%s425 + $0x3f8] sm:$0xff]
    %554 = vxpose.xlu0.b32.start [1/16] %v426, 128
    %555 = vxpose.xlu0.b32.cont [2/16] %v427, 128
    %556 = vxpose.xlu0.b32.cont [3/16] %v428, 128
    %557 = vxpose.xlu0.b32.cont [4/16] %v429, 128
    %558 = vxpose.xlu0.b32.cont [5/16] %v430, 128
    %559 = vxpose.xlu0.b32.cont [6/16] %v431, 128
    %560 = vxpose.xlu0.b32.cont [7/16] %v432, 128
    %561 = vxpose.xlu0.b32.cont [8/16] %v433, 128
    %562 = vxpose.xlu0.b32.cont [9/16] %v434, 128
    %563 = vxpose.xlu0.b32.cont [10/16] %v435, 128
    %564 = vxpose.xlu0.b32.cont [11/16] %v436, 128
    %565 = vxpose.xlu0.b32.cont [12/16] %v437, 128
    %566 = vxpose.xlu0.b32.cont [13/16] %v438, 128
    %567 = vxpose.xlu0.b32.cont [14/16] %v439, 128
    %568 = vxpose.xlu0.b32.cont [15/16] %v440, 128
    %569 = vxpose.xlu0.b32.end [16/16] %v441, 128
    %v570 = vpop.trf.xlu0
    %v571 = vpop.trf.xlu0
    %v572 = vpop.trf.xlu0
    %v573 = vpop.trf.xlu0
    %v574 = vpop.trf.xlu0
    %v575 = vpop.trf.xlu0
    %v576 = vpop.trf.xlu0
    %v577 = vpop.trf.xlu0
    %v578 = vpop.trf.xlu0
    %v579 = vpop.trf.xlu0
    %v580 = vpop.trf.xlu0
    %v581 = vpop.trf.xlu0
    %v582 = vpop.trf.xlu0
    %v583 = vpop.trf.xlu0
    %v584 = vpop.trf.xlu0
    %v585 = vpop.trf.xlu0
    %586 = vxpose.xlu0.b32.start [1/16] %v442, 128
    %587 = vxpose.xlu0.b32.cont [2/16] %v443, 128
    %588 = vxpose.xlu0.b32.cont [3/16] %v444, 128
    %589 = vxpose.xlu0.b32.cont [4/16] %v445, 128
    %590 = vxpose.xlu0.b32.cont [5/16] %v446, 128
    %591 = vxpose.xlu0.b32.cont [6/16] %v447, 128
    %592 = vxpose.xlu0.b32.cont [7/16] %v448, 128
    %593 = vxpose.xlu0.b32.cont [8/16] %v449, 128
    %594 = vxpose.xlu0.b32.cont [9/16] %v450, 128
    %595 = vxpose.xlu0.b32.cont [10/16] %v451, 128
    %596 = vxpose.xlu0.b32.cont [11/16] %v452, 128
    %597 = vxpose.xlu0.b32.cont [12/16] %v453, 128
    %598 = vxpose.xlu0.b32.cont [13/16] %v454, 128
    %599 = vxpose.xlu0.b32.cont [14/16] %v455, 128
    %600 = vxpose.xlu0.b32.cont [15/16] %v456, 128
    %601 = vxpose.xlu0.b32.end [16/16] %v457, 128
    %v602 = vpop.trf.xlu0
    %v603 = vpop.trf.xlu0
    %v604 = vpop.trf.xlu0
    %v605 = vpop.trf.xlu0
    %v606 = vpop.trf.xlu0
    %v607 = vpop.trf.xlu0
    %v608 = vpop.trf.xlu0
    %v609 = vpop.trf.xlu0
    %v610 = vpop.trf.xlu0
    %v611 = vpop.trf.xlu0
    %v612 = vpop.trf.xlu0
    %v613 = vpop.trf.xlu0
    %v614 = vpop.trf.xlu0
    %v615 = vpop.trf.xlu0
    %v616 = vpop.trf.xlu0
    %v617 = vpop.trf.xlu0
    %618 = vxpose.xlu0.b32.start [1/16] %v458, 128
    %619 = vxpose.xlu0.b32.cont [2/16] %v459, 128
    %620 = vxpose.xlu0.b32.cont [3/16] %v460, 128
    %621 = vxpose.xlu0.b32.cont [4/16] %v461, 128
    %622 = vxpose.xlu0.b32.cont [5/16] %v462, 128
    %623 = vxpose.xlu0.b32.cont [6/16] %v463, 128
    %624 = vxpose.xlu0.b32.cont [7/16] %v464, 128
    %625 = vxpose.xlu0.b32.cont [8/16] %v465, 128
    %626 = vxpose.xlu0.b32.cont [9/16] %v466, 128
    %627 = vxpose.xlu0.b32.cont [10/16] %v467, 128
    %628 = vxpose.xlu0.b32.cont [11/16] %v468, 128
    %629 = vxpose.xlu0.b32.cont [12/16] %v469, 128
    %630 = vxpose.xlu0.b32.cont [13/16] %v470, 128
    %631 = vxpose.xlu0.b32.cont [14/16] %v471, 128
    %632 = vxpose.xlu0.b32.cont [15/16] %v472, 128
    %633 = vxpose.xlu0.b32.end [16/16] %v473, 128
    %v634 = vpop.trf.xlu0
    %v635 = vpop.trf.xlu0
    %v636 = vpop.trf.xlu0
    %v637 = vpop.trf.xlu0
    %v638 = vpop.trf.xlu0
    %v639 = vpop.trf.xlu0
    %v640 = vpop.trf.xlu0
    %v641 = vpop.trf.xlu0
    %v642 = vpop.trf.xlu0
    %v643 = vpop.trf.xlu0
    %v644 = vpop.trf.xlu0
    %v645 = vpop.trf.xlu0
    %v646 = vpop.trf.xlu0
    %v647 = vpop.trf.xlu0
    %v648 = vpop.trf.xlu0
    %v649 = vpop.trf.xlu0
    %650 = vxpose.xlu0.b32.start [1/16] %v474, 128
    %651 = vxpose.xlu0.b32.cont [2/16] %v475, 128
    %652 = vxpose.xlu0.b32.cont [3/16] %v476, 128
    %653 = vxpose.xlu0.b32.cont [4/16] %v477, 128
    %654 = vxpose.xlu0.b32.cont [5/16] %v478, 128
    %655 = vxpose.xlu0.b32.cont [6/16] %v479, 128
    %656 = vxpose.xlu0.b32.cont [7/16] %v480, 128
    %657 = vxpose.xlu0.b32.cont [8/16] %v481, 128
    %658 = vxpose.xlu0.b32.cont [9/16] %v482, 128
    %659 = vxpose.xlu0.b32.cont [10/16] %v483, 128
    %660 = vxpose.xlu0.b32.cont [11/16] %v484, 128
    %661 = vxpose.xlu0.b32.cont [12/16] %v485, 128
    %662 = vxpose.xlu0.b32.cont [13/16] %v486, 128
    %663 = vxpose.xlu0.b32.cont [14/16] %v487, 128
    %664 = vxpose.xlu0.b32.cont [15/16] %v488, 128
    %665 = vxpose.xlu0.b32.end [16/16] %v489, 128
    %v666 = vpop.trf.xlu0
    %v667 = vpop.trf.xlu0
    %v668 = vpop.trf.xlu0
    %v669 = vpop.trf.xlu0
    %v670 = vpop.trf.xlu0
    %v671 = vpop.trf.xlu0
    %v672 = vpop.trf.xlu0
    %v673 = vpop.trf.xlu0
    %v674 = vpop.trf.xlu0
    %v675 = vpop.trf.xlu0
    %v676 = vpop.trf.xlu0
    %v677 = vpop.trf.xlu0
    %v678 = vpop.trf.xlu0
    %v679 = vpop.trf.xlu0
    %v680 = vpop.trf.xlu0
    %v681 = vpop.trf.xlu0
    %682 = vxpose.xlu0.b32.start [1/16] %v490, 128
    %683 = vxpose.xlu0.b32.cont [2/16] %v491, 128
    %684 = vxpose.xlu0.b32.cont [3/16] %v492, 128
    %685 = vxpose.xlu0.b32.cont [4/16] %v493, 128
    %686 = vxpose.xlu0.b32.cont [5/16] %v494, 128
    %687 = vxpose.xlu0.b32.cont [6/16] %v495, 128
    %688 = vxpose.xlu0.b32.cont [7/16] %v496, 128
    %689 = vxpose.xlu0.b32.cont [8/16] %v497, 128
    %690 = vxpose.xlu0.b32.cont [9/16] %v498, 128
    %691 = vxpose.xlu0.b32.cont [10/16] %v499, 128
    %692 = vxpose.xlu0.b32.cont [11/16] %v500, 128
    %693 = vxpose.xlu0.b32.cont [12/16] %v501, 128
    %694 = vxpose.xlu0.b32.cont [13/16] %v502, 128
    %695 = vxpose.xlu0.b32.cont [14/16] %v503, 128
    %696 = vxpose.xlu0.b32.cont [15/16] %v504, 128
    %697 = vxpose.xlu0.b32.end [16/16] %v505, 128
    %v698 = vpop.trf.xlu0
    %v699 = vpop.trf.xlu0
    %v700 = vpop.trf.xlu0
    %v701 = vpop.trf.xlu0
    %v702 = vpop.trf.xlu0
    %v703 = vpop.trf.xlu0
    %v704 = vpop.trf.xlu0
    %v705 = vpop.trf.xlu0
    %v706 = vpop.trf.xlu0
    %v707 = vpop.trf.xlu0
    %v708 = vpop.trf.xlu0
    %v709 = vpop.trf.xlu0
    %v710 = vpop.trf.xlu0
    %v711 = vpop.trf.xlu0
    %v712 = vpop.trf.xlu0
    %v713 = vpop.trf.xlu0
    %714 = vxpose.xlu0.b32.start [1/16] %v506, 128
    %715 = vxpose.xlu0.b32.cont [2/16] %v507, 128
    %716 = vxpose.xlu0.b32.cont [3/16] %v508, 128
    %717 = vxpose.xlu0.b32.cont [4/16] %v509, 128
    %718 = vxpose.xlu0.b32.cont [5/16] %v510, 128
    %719 = vxpose.xlu0.b32.cont [6/16] %v511, 128
    %720 = vxpose.xlu0.b32.cont [7/16] %v512, 128
    %721 = vxpose.xlu0.b32.cont [8/16] %v513, 128
    %722 = vxpose.xlu0.b32.cont [9/16] %v514, 128
    %723 = vxpose.xlu0.b32.cont [10/16] %v515, 128
    %724 = vxpose.xlu0.b32.cont [11/16] %v516, 128
    %725 = vxpose.xlu0.b32.cont [12/16] %v517, 128
    %726 = vxpose.xlu0.b32.cont [13/16] %v518, 128
    %727 = vxpose.xlu0.b32.cont [14/16] %v519, 128
    %728 = vxpose.xlu0.b32.cont [15/16] %v520, 128
    %729 = vxpose.xlu0.b32.end [16/16] %v521, 128
    %v730 = vpop.trf.xlu0
    %v731 = vpop.trf.xlu0
    %v732 = vpop.trf.xlu0
    %v733 = vpop.trf.xlu0
    %v734 = vpop.trf.xlu0
    %v735 = vpop.trf.xlu0
    %v736 = vpop.trf.xlu0
    %v737 = vpop.trf.xlu0
    %v738 = vpop.trf.xlu0
    %v739 = vpop.trf.xlu0
    %v740 = vpop.trf.xlu0
    %v741 = vpop.trf.xlu0
    %v742 = vpop.trf.xlu0
    %v743 = vpop.trf.xlu0
    %v744 = vpop.trf.xlu0
    %v745 = vpop.trf.xlu0
    %746 = vxpose.xlu0.b32.start [1/16] %v522, 128
    %747 = vxpose.xlu0.b32.cont [2/16] %v523, 128
    %748 = vxpose.xlu0.b32.cont [3/16] %v524, 128
    %749 = vxpose.xlu0.b32.cont [4/16] %v525, 128
    %750 = vxpose.xlu0.b32.cont [5/16] %v526, 128
    %751 = vxpose.xlu0.b32.cont [6/16] %v527, 128
    %752 = vxpose.xlu0.b32.cont [7/16] %v528, 128
    %753 = vxpose.xlu0.b32.cont [8/16] %v529, 128
    %754 = vxpose.xlu0.b32.cont [9/16] %v530, 128
    %755 = vxpose.xlu0.b32.cont [10/16] %v531, 128
    %756 = vxpose.xlu0.b32.cont [11/16] %v532, 128
    %757 = vxpose.xlu0.b32.cont [12/16] %v533, 128
    %758 = vxpose.xlu0.b32.cont [13/16] %v534, 128
    %759 = vxpose.xlu0.b32.cont [14/16] %v535, 128
    %760 = vxpose.xlu0.b32.cont [15/16] %v536, 128
    %761 = vxpose.xlu0.b32.end [16/16] %v537, 128
    %v762 = vpop.trf.xlu0
    %v763 = vpop.trf.xlu0
    %v764 = vpop.trf.xlu0
    %v765 = vpop.trf.xlu0
    %v766 = vpop.trf.xlu0
    %v767 = vpop.trf.xlu0
    %v768 = vpop.trf.xlu0
    %v769 = vpop.trf.xlu0
    %v770 = vpop.trf.xlu0
    %v771 = vpop.trf.xlu0
    %v772 = vpop.trf.xlu0
    %v773 = vpop.trf.xlu0
    %v774 = vpop.trf.xlu0
    %v775 = vpop.trf.xlu0
    %v776 = vpop.trf.xlu0
    %v777 = vpop.trf.xlu0
    %778 = vxpose.xlu0.b32.start [1/16] %v538, 128
    %779 = vxpose.xlu0.b32.cont [2/16] %v539, 128
    %780 = vxpose.xlu0.b32.cont [3/16] %v540, 128
    %781 = vxpose.xlu0.b32.cont [4/16] %v541, 128
    %782 = vxpose.xlu0.b32.cont [5/16] %v542, 128
    %783 = vxpose.xlu0.b32.cont [6/16] %v543, 128
    %784 = vxpose.xlu0.b32.cont [7/16] %v544, 128
    %785 = vxpose.xlu0.b32.cont [8/16] %v545, 128
    %786 = vxpose.xlu0.b32.cont [9/16] %v546, 128
    %787 = vxpose.xlu0.b32.cont [10/16] %v547, 128
    %788 = vxpose.xlu0.b32.cont [11/16] %v548, 128
    %789 = vxpose.xlu0.b32.cont [12/16] %v549, 128
    %790 = vxpose.xlu0.b32.cont [13/16] %v550, 128
    %791 = vxpose.xlu0.b32.cont [14/16] %v551, 128
    %792 = vxpose.xlu0.b32.cont [15/16] %v552, 128
    %793 = vxpose.xlu0.b32.end [16/16] %v553, 128
    %v794 = vpop.trf.xlu0
    %v795 = vpop.trf.xlu0
    %v796 = vpop.trf.xlu0
    %v797 = vpop.trf.xlu0
    %v798 = vpop.trf.xlu0
    %v799 = vpop.trf.xlu0
    %v800 = vpop.trf.xlu0
    %v801 = vpop.trf.xlu0
    %v802 = vpop.trf.xlu0
    %v803 = vpop.trf.xlu0
    %v804 = vpop.trf.xlu0
    %v805 = vpop.trf.xlu0
    %v806 = vpop.trf.xlu0
    %v807 = vpop.trf.xlu0
    %v808 = vpop.trf.xlu0
    %v809 = vpop.trf.xlu0
    %s810 = scalar_lea.vmem [#allocation2], 256
    %811 = vst [vmem:[%s810] sm:$0xff] %v570
    %812 = vst [vmem:[%s810 + $0x8] sm:$0xff] %v602
    %813 = vst [vmem:[%s810 + $0x10] sm:$0xff] %v634
    %814 = vst [vmem:[%s810 + $0x18] sm:$0xff] %v666
    %815 = vst [vmem:[%s810 + $0x20] sm:$0xff] %v698
    %816 = vst [vmem:[%s810 + $0x28] sm:$0xff] %v730
    %817 = vst [vmem:[%s810 + $0x30] sm:$0xff] %v762
    %818 = vst [vmem:[%s810 + $0x38] sm:$0xff] %v794
    %819 = vst [vmem:[%s810 + $0x40] sm:$0xff] %v571
    %820 = vst [vmem:[%s810 + $0x48] sm:$0xff] %v603
    %821 = vst [vmem:[%s810 + $0x50] sm:$0xff] %v635
    %822 = vst [vmem:[%s810 + $0x58] sm:$0xff] %v667
    %823 = vst [vmem:[%s810 + $0x60] sm:$0xff] %v699
    %824 = vst [vmem:[%s810 + $0x68] sm:$0xff] %v731
    %825 = vst [vmem:[%s810 + $0x70] sm:$0xff] %v763
    %826 = vst [vmem:[%s810 + $0x78] sm:$0xff] %v795
    %827 = vst [vmem:[%s810 + $0x80] sm:$0xff] %v572
    %828 = vst [vmem:[%s810 + $0x88] sm:$0xff] %v604
    %829 = vst [vmem:[%s810 + $0x90] sm:$0xff] %v636
    %830 = vst [vmem:[%s810 + $0x98] sm:$0xff] %v668
    %831 = vst [vmem:[%s810 + $0xa0] sm:$0xff] %v700
    %832 = vst [vmem:[%s810 + $0xa8] sm:$0xff] %v732
    %833 = vst [vmem:[%s810 + $0xb0] sm:$0xff] %v764
    %834 = vst [vmem:[%s810 + $0xb8] sm:$0xff] %v796
    %835 = vst [vmem:[%s810 + $0xc0] sm:$0xff] %v573
    %836 = vst [vmem:[%s810 + $0xc8] sm:$0xff] %v605
    %837 = vst [vmem:[%s810 + $0xd0] sm:$0xff] %v637
    %838 = vst [vmem:[%s810 + $0xd8] sm:$0xff] %v669
    %839 = vst [vmem:[%s810 + $0xe0] sm:$0xff] %v701
    %840 = vst [vmem:[%s810 + $0xe8] sm:$0xff] %v733
    %841 = vst [vmem:[%s810 + $0xf0] sm:$0xff] %v765
    %842 = vst [vmem:[%s810 + $0xf8] sm:$0xff] %v797
    // Predicated region
    $region6: #{tpu_custom_call.1} parent=1 // pred_check
      _
    $region7: #{tpu_custom_call.1} parent=1 // pred_check_branch
      %844 = sbr.rel (0) target = $region9
    $region8: #{tpu_custom_call.1} parent=1 // pred_region
      %s846 = ssub.s32 8192, 8192
      %847 = vsyncadd [#allocation3], %s846
      %s848 = sshll.u32 [#allocation2], 4
      %s849 = int_to_ptr.vmem [resolvable:$true] %s848
      %854 = dma.vmem_to_hbm [thread:$0]  %s849, 8192, %s1, [#allocation3], 1024, 1024, 64
    $region9: #{tpu_custom_call.1} parent=1 // pred_fallthru
      _
    // Predicated region
    $region10: #{tpu_custom_call.1} parent=1 // pred_check
      _
    $region11: #{tpu_custom_call.1} parent=1 // pred_check_branch
      %856 = sbr.rel (0) target = $region13
    $region12: #{tpu_custom_call.1} parent=1 // pred_region
      %857 = dma.done [#allocation3], 8192
    $region13: #{tpu_custom_call.1} parent=1 // pred_fallthru
      _
    %858 = vsyncpa [#allocation3], 1

</llo_original>
